<compile_context>
chip_gen: v7x
topology: tpu7x:2x2x1
jax: 0.10.0
libtpu: 0.0.40
codegen_flags: <defaults>
</compile_context>

<pallas_src>
import functools
import math

import jax
import jax.numpy as jnp
from jax.experimental import pallas as pl
from jax.experimental.pallas import tpu as pltpu

LN_EPS = 1e-12          # BERT LayerNorm epsilon
MASK_BIAS = -1.0e9      # additive bias for masked / cross-sequence keys


def _layer_norm(x, gamma, beta):
    mean = jnp.mean(x, axis=-1, keepdims=True)
    var = jnp.mean(jnp.square(x - mean), axis=-1, keepdims=True)
    return (x - mean) * jax.lax.rsqrt(var + LN_EPS) * gamma + beta


def _gelu(x):
    # TODO(synk): BERT uses the erf-based GELU; the tanh approximation is used
    # because it lowers cleanly to the EUP on all TPU generations.
    c = math.sqrt(2.0 / math.pi)
    return 0.5 * x * (1.0 + jnp.tanh(c * (x + 0.044715 * x * x * x)))


def _mm(a, b):
    """Matmul with bf16 operands (native MXU rate) and f32 accumulation."""
    return jnp.dot(a.astype(jnp.bfloat16), b.astype(jnp.bfloat16),
                   preferred_element_type=jnp.float32)


def _mm_nt(a, b):
    """a @ b.T with bf16 operands and f32 accumulation."""
    return jax.lax.dot_general(a.astype(jnp.bfloat16), b.astype(jnp.bfloat16),
                               (((1,), (1,)), ((), ())),
                               preferred_element_type=jnp.float32)


# ------------------------- fused BERT forward kernel -------------------------

def fused_bert_kernel(emb_ref, bias_ref, eg_ref, eb_ref,
                      wqkv_ref, bqkv_ref, wo_ref, bo_ref,
                      ln1g_ref, ln1b_ref, w1_ref, b1_ref,
                      w2_ref, b2_ref, ln2g_ref, ln2b_ref,
                      out_ref, h_ref, *, num_heads):
    """Grid step = one encoder layer; the (B*S, H) activation is carried across
    layers in the VMEM scratch `h_ref`."""
    layer = pl.program_id(0)

    # Step 0: fused embedding LayerNorm (word + type + position sum is the
    # precomputed `emb` slab).
    @pl.when(layer == 0)
    def _():
        h_ref[...] = _layer_norm(emb_ref[...], eg_ref[...], eb_ref[...])

    h = h_ref[...]                                   # (B*S, H) f32
    rows, hidden = h.shape
    head_dim = hidden // num_heads
    scale = 1.0 / math.sqrt(head_dim)

    wqkv = wqkv_ref[0]                               # (H, 3H)  bf16
    bqkv = bqkv_ref[0]                               # (1, 3H)  f32
    wo = wo_ref[0]                                   # (H, H)   bf16
    key_bias = bias_ref[...]                         # (B*S, B*S) f32

    # Fused QKV projection on the full (B*S, H) slab.
    qkv = _mm(h, wqkv) + bqkv                        # (B*S, 3H) f32
    q = qkv[:, :hidden]
    k = qkv[:, hidden:2 * hidden]
    v = qkv[:, 2 * hidden:]

    attn = None
    for hd in range(num_heads):                      # static, tiny head count
        lo, hi = hd * head_dim, (hd + 1) * head_dim
        # Full (B*S, B*S) scores; cross-sequence + padded keys killed by bias.
        scores = _mm_nt(q[:, lo:hi], k[:, lo:hi]) * scale + key_bias
        m = jnp.max(scores, axis=-1, keepdims=True)
        e = jnp.exp(scores - m)
        probs = e / jnp.sum(e, axis=-1, keepdims=True)
        # TODO(synk): attention-prob dropout not implemented (inference only).
        ctx = _mm(probs, v[:, lo:hi])                # (B*S, d)
        # concat-then-project == sum of per-head projections against W_o slabs
        part = _mm(ctx, wo[lo:hi, :])
        attn = part if attn is None else attn + part
    attn = attn + bo_ref[0]

    h1 = _layer_norm(h + attn, ln1g_ref[0], ln1b_ref[0])

    ff = _gelu(_mm(h1, w1_ref[0]) + b1_ref[0])
    ff = _mm(ff, w2_ref[0]) + b2_ref[0]
    # TODO(synk): hidden-state dropout not implemented (inference only).

    new_h = _layer_norm(h1 + ff, ln2g_ref[0], ln2b_ref[0])
    h_ref[...] = new_h

    @pl.when(layer == pl.num_programs(0) - 1)
    def _():
        out_ref[...] = new_h


# ---------------------------------- wrapper -----------------------------------

def language_embedding_forward(params, sentences, bert_sent, bert_sent_type,
                               bert_sent_mask, *, num_heads):
    """Pallas forward of LanguageEmbeddingLayer: returns bert_output[0]
    (the last hidden state).  `sentences` (the glove path) is unused by the
    reference forward and is ignored here too."""
    del sentences
    batch, seq = bert_sent.shape
    hidden = params["word_emb"].shape[1]
    layers = params["layers"]
    num_layers = len(layers)
    intermediate = layers[0]["w1"].shape[1]
    rows = batch * seq

    # Exact embedding gather in the wrapper (cheap XLA gather; no V-sized
    # one-hot matmul, no vocab table in VMEM).
    word = jnp.take(params["word_emb"], bert_sent.astype(jnp.int32), axis=0)
    typ = jnp.take(params["type_emb"], bert_sent_type.astype(jnp.int32), axis=0)
    pos = params["pos_emb"][:seq][None, :, :]
    emb = (word + typ + pos).reshape(rows, hidden).astype(jnp.float32)

    # Additive attention bias over the folded (B*S) key axis:
    # block-diagonal (no cross-sequence attention) + key-padding mask.
    mask = bert_sent_mask.astype(jnp.float32)                          # (B, S)
    seq_id = jnp.repeat(jnp.arange(batch), seq)                        # (B*S,)
    same_seq = (seq_id[:, None] == seq_id[None, :]).astype(jnp.float32)
    key_ok = jnp.tile(mask.reshape(1, rows), (rows, 1))
    bias = (1.0 - same_seq * key_ok) * MASK_BIAS                       # (B*S, B*S)

    # Stack per-layer weights on a leading layer axis; matmul weights in bf16.
    def stack(name, bf16=False):
        w = jnp.stack([lp[name] for lp in layers], axis=0)
        return w.astype(jnp.bfloat16) if bf16 else w

    wqkv = jnp.stack([jnp.concatenate([lp["wq"], lp["wk"], lp["wv"]], axis=1)
                      for lp in layers], axis=0).astype(jnp.bfloat16)  # (L,H,3H)
    bqkv = jnp.stack([jnp.concatenate([lp["bq"], lp["bk"], lp["bv"]], axis=1)
                      for lp in layers], axis=0)                       # (L,1,3H)
    wo, bo = stack("wo", True), stack("bo")
    ln1g, ln1b = stack("ln1_g"), stack("ln1_b")
    w1, b1 = stack("w1", True), stack("b1")
    w2, b2 = stack("w2", True), stack("b2")
    ln2g, ln2b = stack("ln2_g"), stack("ln2_b")

    args = (emb, bias, params["emb_ln_g"], params["emb_ln_b"],
            wqkv, bqkv, wo, bo, ln1g, ln1b, w1, b1, w2, b2, ln2g, ln2b)

    const_2d = lambda l: (0, 0)            # resident across the layer grid
    per_layer = lambda l: (l, 0, 0)        # stream one layer's slab per step

    in_specs = (
        [pl.BlockSpec(emb.shape, const_2d),
         pl.BlockSpec(bias.shape, const_2d),
         pl.BlockSpec(params["emb_ln_g"].shape, const_2d),
         pl.BlockSpec(params["emb_ln_b"].shape, const_2d)]
        + [pl.BlockSpec((1,) + a.shape[1:], per_layer)
           for a in (wqkv, bqkv, wo, bo, ln1g, ln1b, w1, b1, w2, b2, ln2g, ln2b)]
    )

    out_shape = jax.ShapeDtypeStruct((rows, hidden), jnp.float32)
    flops = int(num_layers * rows * (2 * hidden * 3 * hidden      # fused QKV
                                     + 4 * rows * hidden          # scores + ctx
                                     + 2 * hidden * hidden        # out proj
                                     + 4 * hidden * intermediate))  # FFN
    cost = pl.CostEstimate(
        flops=flops,
        transcendentals=int(num_layers * rows * (intermediate + num_heads * rows)),
        bytes_accessed=sum(int(a.size) * a.dtype.itemsize for a in args)
        + rows * hidden * 4,
    )

    out = pl.pallas_call(
        functools.partial(fused_bert_kernel, num_heads=num_heads),
        grid=(num_layers,),
        in_specs=in_specs,
        out_specs=pl.BlockSpec((rows, hidden), const_2d),
        out_shape=out_shape,
        scratch_shapes=[pltpu.VMEM((rows, hidden), jnp.float32)],
        compiler_params=pltpu.CompilerParams(
            dimension_semantics=("arbitrary",)),   # layer axis is sequential
        cost_estimate=cost,
    )(*args)
    return out.reshape(batch, seq, hidden)


# --------------------------- params / pure-JAX reference ---------------------

def init_params(key, *, vocab, max_pos, hidden, intermediate, num_layers):
    std = 0.02
    k_emb, k_layers = jax.random.split(key)
    ke = jax.random.split(k_emb, 5)
    params = {
        "word_emb": std * jax.random.normal(ke[0], (vocab, hidden), jnp.float32),
        "type_emb": std * jax.random.normal(ke[1], (2, hidden), jnp.float32),
        "pos_emb":  std * jax.random.normal(ke[2], (max_pos, hidden), jnp.float32),
        "emb_ln_g": 1.0 + std * jax.random.normal(ke[3], (1, hidden), jnp.float32),
        "emb_ln_b": std * jax.random.normal(ke[4], (1, hidden), jnp.float32),
        "layers": [],
    }
    for kl in jax.random.split(k_layers, num_layers):
        k = jax.random.split(kl, 16)
        params["layers"].append({
            "wq": std * jax.random.normal(k[0], (hidden, hidden), jnp.float32),
            "bq": std * jax.random.normal(k[1], (1, hidden), jnp.float32),
            "wk": std * jax.random.normal(k[2], (hidden, hidden), jnp.float32),
            "bk": std * jax.random.normal(k[3], (1, hidden), jnp.float32),
            "wv": std * jax.random.normal(k[4], (hidden, hidden), jnp.float32),
            "bv": std * jax.random.normal(k[5], (1, hidden), jnp.float32),
            "wo": std * jax.random.normal(k[6], (hidden, hidden), jnp.float32),
            "bo": std * jax.random.normal(k[7], (1, hidden), jnp.float32),
            "ln1_g": 1.0 + std * jax.random.normal(k[8], (1, hidden), jnp.float32),
            "ln1_b": std * jax.random.normal(k[9], (1, hidden), jnp.float32),
            "w1": std * jax.random.normal(k[10], (hidden, intermediate), jnp.float32),
            "b1": std * jax.random.normal(k[11], (1, intermediate), jnp.float32),
            "w2": std * jax.random.normal(k[12], (intermediate, hidden), jnp.float32),
            "b2": std * jax.random.normal(k[13], (1, hidden), jnp.float32),
            "ln2_g": 1.0 + std * jax.random.normal(k[14], (1, hidden), jnp.float32),
            "ln2_b": std * jax.random.normal(k[15], (1, hidden), jnp.float32),
        })
    return params


def language_embedding_ref(params, bert_sent, bert_sent_type, bert_sent_mask,
                           *, num_heads):
    """Pure-JAX reference with the same mixed-precision (bf16 matmul operands,
    f32 accumulation / elementwise) as the kernel."""
    batch, seq = bert_sent.shape
    hidden = params["word_emb"].shape[1]
    head_dim = hidden // num_heads
    scale = 1.0 / math.sqrt(head_dim)

    emb = (params["word_emb"][bert_sent] + params["type_emb"][bert_sent_type]
           + params["pos_emb"][:seq][None, :, :])
    h = _layer_norm(emb, params["emb_ln_g"], params["emb_ln_b"])      # (B,S,H)
    key_bias = (1.0 - bert_sent_mask.astype(jnp.float32))[:, None, :] * MASK_BIAS

    for lp in params["layers"]:
        q = _mm(h, lp["wq"]) + lp["bq"]
        k = _mm(h, lp["wk"]) + lp["bk"]
        v = _mm(h, lp["wv"]) + lp["bv"]
        attn = None
        for hd in range(num_heads):
            lo, hi = hd * head_dim, (hd + 1) * head_dim
            qh, kh, vh = q[..., lo:hi], k[..., lo:hi], v[..., lo:hi]
            s = jnp.einsum("bqd,bkd->bqk",
                           qh.astype(jnp.bfloat16), kh.astype(jnp.bfloat16),
                           preferred_element_type=jnp.float32) * scale + key_bias
            m = jnp.max(s, axis=-1, keepdims=True)
            e = jnp.exp(s - m)
            p = e / jnp.sum(e, axis=-1, keepdims=True)
            ctx = jnp.einsum("bqk,bkd->bqd",
                             p.astype(jnp.bfloat16), vh.astype(jnp.bfloat16),
                             preferred_element_type=jnp.float32)
            part = _mm(ctx, lp["wo"][lo:hi, :])
            attn = part if attn is None else attn + part
        attn = attn + lp["bo"]
        h1 = _layer_norm(h + attn, lp["ln1_g"], lp["ln1_b"])
        ff = _gelu(_mm(h1, lp["w1"]) + lp["b1"])
        ff = _mm(ff, lp["w2"]) + lp["b2"]
        h = _layer_norm(h1 + ff, lp["ln2_g"], lp["ln2_b"])
    return h


if __name__ == "__main__":
    BATCH, SEQ, HIDDEN = 2, 16, 128
    NUM_HEADS, INTERMEDIATE, NUM_LAYERS, VOCAB = 2, 256, 2, 1024

    root = jax.random.PRNGKey(0)
    kparam, kids = jax.random.split(root)
    params = init_params(kparam, vocab=VOCAB, max_pos=SEQ, hidden=HIDDEN,
                         intermediate=INTERMEDIATE, num_layers=NUM_LAYERS)

    bert_sent = jax.random.randint(kids, (BATCH, SEQ), 0, VOCAB, dtype=jnp.int32)
    bert_sent_type = jnp.concatenate(
        [jnp.zeros((BATCH, SEQ // 2), jnp.int32),
         jnp.ones((BATCH, SEQ // 2), jnp.int32)], axis=1)
    # second sequence has 4 padded (masked) positions at the end
    bert_sent_mask = jnp.ones((BATCH, SEQ), jnp.float32).at[1, SEQ - 4:].set(0.0)
    sentences = None   # glove path; unused by the reference forward

    out = language_embedding_forward(params, sentences, bert_sent,
                                     bert_sent_type, bert_sent_mask,
                                     num_heads=NUM_HEADS)
    out = jax.block_until_ready(out)

    ref = language_embedding_ref(params, bert_sent, bert_sent_type,
                                 bert_sent_mask, num_heads=NUM_HEADS)

    assert out.shape == (BATCH, SEQ, HIDDEN)
    max_err = float(jnp.max(jnp.abs(out - ref)))
    # Kernel and reference share the exact same mixed-precision recipe, so the
    # tolerance only covers MXU/XLA accumulation-order and EUP approximation
    # differences (tightened vs. the previous 2e-2).
    assert jnp.allclose(out, ref, atol=5e-3, rtol=5e-3), max_err
    print("KERNEL_OK")
</pallas_src>

<mosaic_0001>
module attributes {stable_mosaic.version = 11 : i64} {
  func.func @fused_bert_kernel(%arg0: i32, %arg1: memref<32x128xf32, #tpu.memory_space<vmem>>, %arg2: memref<32x32xf32, #tpu.memory_space<vmem>>, %arg3: memref<1x128xf32, #tpu.memory_space<vmem>>, %arg4: memref<1x128xf32, #tpu.memory_space<vmem>>, %arg5: memref<1x128x384xbf16, #tpu.memory_space<vmem>>, %arg6: memref<1x1x384xf32, #tpu.memory_space<vmem>>, %arg7: memref<1x128x128xbf16, #tpu.memory_space<vmem>>, %arg8: memref<1x1x128xf32, #tpu.memory_space<vmem>>, %arg9: memref<1x1x128xf32, #tpu.memory_space<vmem>>, %arg10: memref<1x1x128xf32, #tpu.memory_space<vmem>>, %arg11: memref<1x128x256xbf16, #tpu.memory_space<vmem>>, %arg12: memref<1x1x256xf32, #tpu.memory_space<vmem>>, %arg13: memref<1x256x128xbf16, #tpu.memory_space<vmem>>, %arg14: memref<1x1x128xf32, #tpu.memory_space<vmem>>, %arg15: memref<1x1x128xf32, #tpu.memory_space<vmem>>, %arg16: memref<1x1x128xf32, #tpu.memory_space<vmem>>, %arg17: memref<32x128xf32, #tpu.memory_space<vmem>>, %arg18: memref<32x128xf32, #tpu.memory_space<vmem>>) attributes {dimension_semantics = [#tpu.dimension_semantics<arbitrary>], iteration_bounds = array<i64: 2>, scalar_prefetch = 0 : i64, scratch_operands = 1 : i64, tpu.core_type = #tpu.core_type<tc>, window_params = [{pipeline_mode = #tpu.pipeline_mode<synchronous>, transform_indices = @transform_0, window_bounds = array<i64: 32, 128>}, {pipeline_mode = #tpu.pipeline_mode<synchronous>, transform_indices = @transform_1, window_bounds = array<i64: 32, 32>}, {pipeline_mode = #tpu.pipeline_mode<synchronous>, transform_indices = @transform_2, window_bounds = array<i64: 1, 128>}, {pipeline_mode = #tpu.pipeline_mode<synchronous>, transform_indices = @transform_3, window_bounds = array<i64: 1, 128>}, {transform_indices = @transform_4, window_bounds = array<i64: 1, 128, 384>}, {transform_indices = @transform_5, window_bounds = array<i64: 1, 1, 384>}, {transform_indices = @transform_6, window_bounds = array<i64: 1, 128, 128>}, {transform_indices = @transform_7, window_bounds = array<i64: 1, 1, 128>}, {transform_indices = @transform_8, window_bounds = array<i64: 1, 1, 128>}, {transform_indices = @transform_9, window_bounds = array<i64: 1, 1, 128>}, {transform_indices = @transform_10, window_bounds = array<i64: 1, 128, 256>}, {transform_indices = @transform_11, window_bounds = array<i64: 1, 1, 256>}, {transform_indices = @transform_12, window_bounds = array<i64: 1, 256, 128>}, {transform_indices = @transform_13, window_bounds = array<i64: 1, 1, 128>}, {transform_indices = @transform_14, window_bounds = array<i64: 1, 1, 128>}, {transform_indices = @transform_15, window_bounds = array<i64: 1, 1, 128>}, {pipeline_mode = #tpu.pipeline_mode<synchronous>, transform_indices = @transform_16, window_bounds = array<i64: 32, 128>}]} {
    %c0_i32 = arith.constant 0 : i32
    %0 = arith.cmpi eq, %arg0, %c0_i32 : i32
    %1 = arith.extui %0 : i1 to i32
    %c0_i32_0 = arith.constant 0 : i32
    %2 = arith.cmpi ne, %1, %c0_i32_0 : i32
    scf.if %2 {
      %c0_71 = arith.constant 0 : index
      %c0_72 = arith.constant 0 : index
      %158 = vector.load %arg1[%c0_71, %c0_72] : memref<32x128xf32, #tpu.memory_space<vmem>>, vector<32x128xf32>
      %c0_73 = arith.constant 0 : index
      %c0_74 = arith.constant 0 : index
      %159 = vector.load %arg3[%c0_73, %c0_74] : memref<1x128xf32, #tpu.memory_space<vmem>>, vector<1x128xf32>
      %c0_75 = arith.constant 0 : index
      %c0_76 = arith.constant 0 : index
      %160 = vector.load %arg4[%c0_75, %c0_76] : memref<1x128xf32, #tpu.memory_space<vmem>>, vector<1x128xf32>
      %cst_77 = arith.constant dense<0.000000e+00> : vector<32xf32>
      %161 = vector.multi_reduction <add>, %158, %cst_77 [1] : vector<32x128xf32> to vector<32xf32>
      %162 = vector.shape_cast %161 : vector<32xf32> to vector<32x1xf32>
      %cst_78 = arith.constant 1.280000e+02 : f32
      %163 = vector.broadcast %cst_78 : f32 to vector<32x1xf32>
      %164 = arith.divf %162, %163 : vector<32x1xf32>
      %165 = vector.broadcast %164 : vector<32x1xf32> to vector<32x128xf32>
      %166 = arith.subf %158, %165 : vector<32x128xf32>
      %167 = arith.mulf %166, %166 : vector<32x128xf32>
      %cst_79 = arith.constant dense<0.000000e+00> : vector<32xf32>
      %168 = vector.multi_reduction <add>, %167, %cst_79 [1] : vector<32x128xf32> to vector<32xf32>
      %169 = vector.shape_cast %168 : vector<32xf32> to vector<32x1xf32>
      %cst_80 = arith.constant 1.280000e+02 : f32
      %170 = vector.broadcast %cst_80 : f32 to vector<32x1xf32>
      %171 = arith.divf %169, %170 : vector<32x1xf32>
      %172 = vector.broadcast %164 : vector<32x1xf32> to vector<32x128xf32>
      %173 = arith.subf %158, %172 : vector<32x128xf32>
      %cst_81 = arith.constant 9.99999996E-13 : f32
      %174 = vector.broadcast %cst_81 : f32 to vector<32x1xf32>
      %175 = arith.addf %171, %174 : vector<32x1xf32>
      %176 = math.rsqrt %175 : vector<32x1xf32>
      %177 = vector.broadcast %176 : vector<32x1xf32> to vector<32x128xf32>
      %178 = arith.mulf %173, %177 : vector<32x128xf32>
      %179 = vector.broadcast %159 : vector<1x128xf32> to vector<32x128xf32>
      %180 = arith.mulf %178, %179 : vector<32x128xf32>
      %181 = vector.broadcast %160 : vector<1x128xf32> to vector<32x128xf32>
      %182 = arith.addf %180, %181 : vector<32x128xf32>
      %c0_82 = arith.constant 0 : index
      %c0_83 = arith.constant 0 : index
      %183 = vector.load %arg18[%c0_82, %c0_83] : memref<32x128xf32, #tpu.memory_space<vmem>>, vector<32x128xf32>
      tpu.vector_store %arg18[%c0_82, %c0_83], %182 {strides = array<i32>} : memref<32x128xf32, #tpu.memory_space<vmem>>, vector<32x128xf32>,
    } else {
    }
    %c0 = arith.constant 0 : index
    %c0_1 = arith.constant 0 : index
    %3 = vector.load %arg18[%c0, %c0_1] : memref<32x128xf32, #tpu.memory_space<vmem>>, vector<32x128xf32>
    %c0_2 = arith.constant 0 : index
    %c0_3 = arith.constant 0 : index
    %c0_4 = arith.constant 0 : index
    %4 = vector.load %arg5[%c0_2, %c0_3, %c0_4] : memref<1x128x384xbf16, #tpu.memory_space<vmem>>, vector<1x128x384xbf16>
    %5 = vector.shape_cast %4 : vector<1x128x384xbf16> to vector<128x384xbf16>
    %c0_5 = arith.constant 0 : index
    %c0_6 = arith.constant 0 : index
    %c0_7 = arith.constant 0 : index
    %6 = vector.load %arg6[%c0_5, %c0_6, %c0_7] : memref<1x1x384xf32, #tpu.memory_space<vmem>>, vector<1x1x384xf32>
    %7 = vector.shape_cast %6 : vector<1x1x384xf32> to vector<1x384xf32>
    %c0_8 = arith.constant 0 : index
    %c0_9 = arith.constant 0 : index
    %c0_10 = arith.constant 0 : index
    %8 = vector.load %arg7[%c0_8, %c0_9, %c0_10] : memref<1x128x128xbf16, #tpu.memory_space<vmem>>, vector<1x128x128xbf16>
    %9 = vector.shape_cast %8 : vector<1x128x128xbf16> to vector<128x128xbf16>
    %c0_11 = arith.constant 0 : index
    %c0_12 = arith.constant 0 : index
    %10 = vector.load %arg2[%c0_11, %c0_12] : memref<32x32xf32, #tpu.memory_space<vmem>>, vector<32x32xf32>
    %11 = arith.truncf %3 : vector<32x128xf32> to vector<32x128xbf16>
    %cst = arith.constant dense<0.000000e+00> : vector<32x384xf32>
    %12 = tpu.matmul %11, %5, %cst {dimension_numbers = #tpu.dot_dimension_numbers<[1], [0], [0], [1], [0, 0, 1, 1], [], []>} : vector<32x128xbf16>, vector<128x384xbf16>, vector<32x384xf32> -> vector<32x384xf32>
    %13 = vector.broadcast %7 : vector<1x384xf32> to vector<32x384xf32>
    %14 = arith.addf %12, %13 : vector<32x384xf32>
    %15 = vector.extract_strided_slice %14 {offsets = [0, 0], sizes = [32, 128], strides = [1, 1]} : vector<32x384xf32> to vector<32x128xf32>
    %16 = vector.extract_strided_slice %14 {offsets = [0, 128], sizes = [32, 128], strides = [1, 1]} : vector<32x384xf32> to vector<32x128xf32>
    %17 = vector.extract_strided_slice %14 {offsets = [0, 256], sizes = [32, 128], strides = [1, 1]} : vector<32x384xf32> to vector<32x128xf32>
    %18 = vector.extract_strided_slice %15 {offsets = [0, 0], sizes = [32, 64], strides = [1, 1]} : vector<32x128xf32> to vector<32x64xf32>
    %19 = vector.extract_strided_slice %16 {offsets = [0, 0], sizes = [32, 64], strides = [1, 1]} : vector<32x128xf32> to vector<32x64xf32>
    %20 = arith.truncf %18 : vector<32x64xf32> to vector<32x64xbf16>
    %21 = arith.truncf %19 : vector<32x64xf32> to vector<32x64xbf16>
    %cst_13 = arith.constant dense<0.000000e+00> : vector<32x32xf32>
    %22 = tpu.matmul %20, %21, %cst_13 {dimension_numbers = #tpu.dot_dimension_numbers<[1], [1], [0], [0], [0, 0, 1, 0], [], []>} : vector<32x64xbf16>, vector<32x64xbf16>, vector<32x32xf32> -> vector<32x32xf32>
    %cst_14 = arith.constant 1.250000e-01 : f32
    %23 = vector.broadcast %cst_14 : f32 to vector<32x32xf32>
    %24 = arith.mulf %22, %23 : vector<32x32xf32>
    %25 = arith.addf %24, %10 : vector<32x32xf32>
    %cst_15 = arith.constant dense<0xFF800000> : vector<32xf32>
    %26 = vector.multi_reduction <maximumf>, %25, %cst_15 [1] : vector<32x32xf32> to vector<32xf32>
    %27 = vector.shape_cast %26 : vector<32xf32> to vector<32x1xf32>
    %28 = vector.broadcast %27 : vector<32x1xf32> to vector<32x32xf32>
    %29 = arith.subf %25, %28 : vector<32x32xf32>
    %30 = math.exp %29 : vector<32x32xf32>
    %cst_16 = arith.constant dense<0.000000e+00> : vector<32xf32>
    %31 = vector.multi_reduction <add>, %30, %cst_16 [1] : vector<32x32xf32> to vector<32xf32>
    %32 = vector.shape_cast %31 : vector<32xf32> to vector<32x1xf32>
    %33 = vector.broadcast %32 : vector<32x1xf32> to vector<32x32xf32>
    %34 = arith.divf %30, %33 : vector<32x32xf32>
    %35 = vector.extract_strided_slice %17 {offsets = [0, 0], sizes = [32, 64], strides = [1, 1]} : vector<32x128xf32> to vector<32x64xf32>
    %36 = arith.truncf %34 : vector<32x32xf32> to vector<32x32xbf16>
    %37 = arith.truncf %35 : vector<32x64xf32> to vector<32x64xbf16>
    %cst_17 = arith.constant dense<0.000000e+00> : vector<32x64xf32>
    %38 = tpu.matmul %36, %37, %cst_17 {dimension_numbers = #tpu.dot_dimension_numbers<[1], [0], [0], [1], [0, 0, 1, 1], [], []>} : vector<32x32xbf16>, vector<32x64xbf16>, vector<32x64xf32> -> vector<32x64xf32>
    %39 = vector.extract_strided_slice %9 {offsets = [0, 0], sizes = [64, 128], strides = [1, 1]} : vector<128x128xbf16> to vector<64x128xbf16>
    %40 = arith.truncf %38 : vector<32x64xf32> to vector<32x64xbf16>
    %cst_18 = arith.constant dense<0.000000e+00> : vector<32x128xf32>
    %41 = tpu.matmul %40, %39, %cst_18 {dimension_numbers = #tpu.dot_dimension_numbers<[1], [0], [0], [1], [0, 0, 1, 1], [], []>} : vector<32x64xbf16>, vector<64x128xbf16>, vector<32x128xf32> -> vector<32x128xf32>
    %42 = vector.extract_strided_slice %15 {offsets = [0, 64], sizes = [32, 64], strides = [1, 1]} : vector<32x128xf32> to vector<32x64xf32>
    %43 = vector.extract_strided_slice %16 {offsets = [0, 64], sizes = [32, 64], strides = [1, 1]} : vector<32x128xf32> to vector<32x64xf32>
    %44 = arith.truncf %42 : vector<32x64xf32> to vector<32x64xbf16>
    %45 = arith.truncf %43 : vector<32x64xf32> to vector<32x64xbf16>
    %cst_19 = arith.constant dense<0.000000e+00> : vector<32x32xf32>
    %46 = tpu.matmul %44, %45, %cst_19 {dimension_numbers = #tpu.dot_dimension_numbers<[1], [1], [0], [0], [0, 0, 1, 0], [], []>} : vector<32x64xbf16>, vector<32x64xbf16>, vector<32x32xf32> -> vector<32x32xf32>
    %cst_20 = arith.constant 1.250000e-01 : f32
    %47 = vector.broadcast %cst_20 : f32 to vector<32x32xf32>
    %48 = arith.mulf %46, %47 : vector<32x32xf32>
    %49 = arith.addf %48, %10 : vector<32x32xf32>
    %cst_21 = arith.constant dense<0xFF800000> : vector<32xf32>
    %50 = vector.multi_reduction <maximumf>, %49, %cst_21 [1] : vector<32x32xf32> to vector<32xf32>
    %51 = vector.shape_cast %50 : vector<32xf32> to vector<32x1xf32>
    %52 = vector.broadcast %51 : vector<32x1xf32> to vector<32x32xf32>
    %53 = arith.subf %49, %52 : vector<32x32xf32>
    %54 = math.exp %53 : vector<32x32xf32>
    %cst_22 = arith.constant dense<0.000000e+00> : vector<32xf32>
    %55 = vector.multi_reduction <add>, %54, %cst_22 [1] : vector<32x32xf32> to vector<32xf32>
    %56 = vector.shape_cast %55 : vector<32xf32> to vector<32x1xf32>
    %57 = vector.broadcast %56 : vector<32x1xf32> to vector<32x32xf32>
    %58 = arith.divf %54, %57 : vector<32x32xf32>
    %59 = vector.extract_strided_slice %17 {offsets = [0, 64], sizes = [32, 64], strides = [1, 1]} : vector<32x128xf32> to vector<32x64xf32>
    %60 = arith.truncf %58 : vector<32x32xf32> to vector<32x32xbf16>
    %61 = arith.truncf %59 : vector<32x64xf32> to vector<32x64xbf16>
    %cst_23 = arith.constant dense<0.000000e+00> : vector<32x64xf32>
    %62 = tpu.matmul %60, %61, %cst_23 {dimension_numbers = #tpu.dot_dimension_numbers<[1], [0], [0], [1], [0, 0, 1, 1], [], []>} : vector<32x32xbf16>, vector<32x64xbf16>, vector<32x64xf32> -> vector<32x64xf32>
    %63 = vector.extract_strided_slice %9 {offsets = [64, 0], sizes = [64, 128], strides = [1, 1]} : vector<128x128xbf16> to vector<64x128xbf16>
    %64 = arith.truncf %62 : vector<32x64xf32> to vector<32x64xbf16>
    %cst_24 = arith.constant dense<0.000000e+00> : vector<32x128xf32>
    %65 = tpu.matmul %64, %63, %cst_24 {dimension_numbers = #tpu.dot_dimension_numbers<[1], [0], [0], [1], [0, 0, 1, 1], [], []>} : vector<32x64xbf16>, vector<64x128xbf16>, vector<32x128xf32> -> vector<32x128xf32>
    %66 = arith.addf %41, %65 : vector<32x128xf32>
    %c0_25 = arith.constant 0 : index
    %c0_26 = arith.constant 0 : index
    %c0_27 = arith.constant 0 : index
    %67 = vector.load %arg8[%c0_25, %c0_26, %c0_27] : memref<1x1x128xf32, #tpu.memory_space<vmem>>, vector<1x1x128xf32>
    %68 = vector.shape_cast %67 : vector<1x1x128xf32> to vector<1x128xf32>
    %69 = vector.broadcast %68 : vector<1x128xf32> to vector<32x128xf32>
    %70 = arith.addf %66, %69 : vector<32x128xf32>
    %71 = arith.addf %3, %70 : vector<32x128xf32>
    %c0_28 = arith.constant 0 : index
    %c0_29 = arith.constant 0 : index
    %c0_30 = arith.constant 0 : index
    %72 = vector.load %arg9[%c0_28, %c0_29, %c0_30] : memref<1x1x128xf32, #tpu.memory_space<vmem>>, vector<1x1x128xf32>
    %73 = vector.shape_cast %72 : vector<1x1x128xf32> to vector<1x128xf32>
    %c0_31 = arith.constant 0 : index
    %c0_32 = arith.constant 0 : index
    %c0_33 = arith.constant 0 : index
    %74 = vector.load %arg10[%c0_31, %c0_32, %c0_33] : memref<1x1x128xf32, #tpu.memory_space<vmem>>, vector<1x1x128xf32>
    %75 = vector.shape_cast %74 : vector<1x1x128xf32> to vector<1x128xf32>
    %cst_34 = arith.constant dense<0.000000e+00> : vector<32xf32>
    %76 = vector.multi_reduction <add>, %71, %cst_34 [1] : vector<32x128xf32> to vector<32xf32>
    %77 = vector.shape_cast %76 : vector<32xf32> to vector<32x1xf32>
    %cst_35 = arith.constant 1.280000e+02 : f32
    %78 = vector.broadcast %cst_35 : f32 to vector<32x1xf32>
    %79 = arith.divf %77, %78 : vector<32x1xf32>
    %80 = vector.broadcast %79 : vector<32x1xf32> to vector<32x128xf32>
    %81 = arith.subf %71, %80 : vector<32x128xf32>
    %82 = arith.mulf %81, %81 : vector<32x128xf32>
    %cst_36 = arith.constant dense<0.000000e+00> : vector<32xf32>
    %83 = vector.multi_reduction <add>, %82, %cst_36 [1] : vector<32x128xf32> to vector<32xf32>
    %84 = vector.shape_cast %83 : vector<32xf32> to vector<32x1xf32>
    %cst_37 = arith.constant 1.280000e+02 : f32
    %85 = vector.broadcast %cst_37 : f32 to vector<32x1xf32>
    %86 = arith.divf %84, %85 : vector<32x1xf32>
    %87 = vector.broadcast %79 : vector<32x1xf32> to vector<32x128xf32>
    %88 = arith.subf %71, %87 : vector<32x128xf32>
    %cst_38 = arith.constant 9.99999996E-13 : f32
    %89 = vector.broadcast %cst_38 : f32 to vector<32x1xf32>
    %90 = arith.addf %86, %89 : vector<32x1xf32>
    %91 = math.rsqrt %90 : vector<32x1xf32>
    %92 = vector.broadcast %91 : vector<32x1xf32> to vector<32x128xf32>
    %93 = arith.mulf %88, %92 : vector<32x128xf32>
    %94 = vector.broadcast %73 : vector<1x128xf32> to vector<32x128xf32>
    %95 = arith.mulf %93, %94 : vector<32x128xf32>
    %96 = vector.broadcast %75 : vector<1x128xf32> to vector<32x128xf32>
    %97 = arith.addf %95, %96 : vector<32x128xf32>
    %c0_39 = arith.constant 0 : index
    %c0_40 = arith.constant 0 : index
    %c0_41 = arith.constant 0 : index
    %98 = vector.load %arg11[%c0_39, %c0_40, %c0_41] : memref<1x128x256xbf16, #tpu.memory_space<vmem>>, vector<1x128x256xbf16>
    %99 = vector.shape_cast %98 : vector<1x128x256xbf16> to vector<128x256xbf16>
    %100 = arith.truncf %97 : vector<32x128xf32> to vector<32x128xbf16>
    %cst_42 = arith.constant dense<0.000000e+00> : vector<32x256xf32>
    %101 = tpu.matmul %100, %99, %cst_42 {dimension_numbers = #tpu.dot_dimension_numbers<[1], [0], [0], [1], [0, 0, 1, 1], [], []>} : vector<32x128xbf16>, vector<128x256xbf16>, vector<32x256xf32> -> vector<32x256xf32>
    %c0_43 = arith.constant 0 : index
    %c0_44 = arith.constant 0 : index
    %c0_45 = arith.constant 0 : index
    %102 = vector.load %arg12[%c0_43, %c0_44, %c0_45] : memref<1x1x256xf32, #tpu.memory_space<vmem>>, vector<1x1x256xf32>
    %103 = vector.shape_cast %102 : vector<1x1x256xf32> to vector<1x256xf32>
    %104 = vector.broadcast %103 : vector<1x256xf32> to vector<32x256xf32>
    %105 = arith.addf %101, %104 : vector<32x256xf32>
    %cst_46 = arith.constant 5.000000e-01 : f32
    %106 = vector.broadcast %cst_46 : f32 to vector<32x256xf32>
    %107 = arith.mulf %106, %105 : vector<32x256xf32>
    %cst_47 = arith.constant 4.471500e-02 : f32
    %108 = vector.broadcast %cst_47 : f32 to vector<32x256xf32>
    %109 = arith.mulf %108, %105 : vector<32x256xf32>
    %110 = arith.mulf %109, %105 : vector<32x256xf32>
    %111 = arith.mulf %110, %105 : vector<32x256xf32>
    %112 = arith.addf %105, %111 : vector<32x256xf32>
    %cst_48 = arith.constant 0.797884583 : f32
    %113 = vector.broadcast %cst_48 : f32 to vector<32x256xf32>
    %114 = arith.mulf %113, %112 : vector<32x256xf32>
    %115 = math.tanh %114 : vector<32x256xf32>
    %cst_49 = arith.constant 1.000000e+00 : f32
    %116 = vector.broadcast %cst_49 : f32 to vector<32x256xf32>
    %117 = arith.addf %116, %115 : vector<32x256xf32>
    %118 = arith.mulf %107, %117 : vector<32x256xf32>
    %c0_50 = arith.constant 0 : index
    %c0_51 = arith.constant 0 : index
    %c0_52 = arith.constant 0 : index
    %119 = vector.load %arg13[%c0_50, %c0_51, %c0_52] : memref<1x256x128xbf16, #tpu.memory_space<vmem>>, vector<1x256x128xbf16>
    %120 = vector.shape_cast %119 : vector<1x256x128xbf16> to vector<256x128xbf16>
    %121 = arith.truncf %118 : vector<32x256xf32> to vector<32x256xbf16>
    %cst_53 = arith.constant dense<0.000000e+00> : vector<32x128xf32>
    %122 = tpu.matmul %121, %120, %cst_53 {dimension_numbers = #tpu.dot_dimension_numbers<[1], [0], [0], [1], [0, 0, 1, 1], [], []>} : vector<32x256xbf16>, vector<256x128xbf16>, vector<32x128xf32> -> vector<32x128xf32>
    %c0_54 = arith.constant 0 : index
    %c0_55 = arith.constant 0 : index
    %c0_56 = arith.constant 0 : index
    %123 = vector.load %arg14[%c0_54, %c0_55, %c0_56] : memref<1x1x128xf32, #tpu.memory_space<vmem>>, vector<1x1x128xf32>
    %124 = vector.shape_cast %123 : vector<1x1x128xf32> to vector<1x128xf32>
    %125 = vector.broadcast %124 : vector<1x128xf32> to vector<32x128xf32>
    %126 = arith.addf %122, %125 : vector<32x128xf32>
    %127 = arith.addf %97, %126 : vector<32x128xf32>
    %c0_57 = arith.constant 0 : index
    %c0_58 = arith.constant 0 : index
    %c0_59 = arith.constant 0 : index
    %128 = vector.load %arg15[%c0_57, %c0_58, %c0_59] : memref<1x1x128xf32, #tpu.memory_space<vmem>>, vector<1x1x128xf32>
    %129 = vector.shape_cast %128 : vector<1x1x128xf32> to vector<1x128xf32>
    %c0_60 = arith.constant 0 : index
    %c0_61 = arith.constant 0 : index
    %c0_62 = arith.constant 0 : index
    %130 = vector.load %arg16[%c0_60, %c0_61, %c0_62] : memref<1x1x128xf32, #tpu.memory_space<vmem>>, vector<1x1x128xf32>
    %131 = vector.shape_cast %130 : vector<1x1x128xf32> to vector<1x128xf32>
    %cst_63 = arith.constant dense<0.000000e+00> : vector<32xf32>
    %132 = vector.multi_reduction <add>, %127, %cst_63 [1] : vector<32x128xf32> to vector<32xf32>
    %133 = vector.shape_cast %132 : vector<32xf32> to vector<32x1xf32>
    %cst_64 = arith.constant 1.280000e+02 : f32
    %134 = vector.broadcast %cst_64 : f32 to vector<32x1xf32>
    %135 = arith.divf %133, %134 : vector<32x1xf32>
    %136 = vector.broadcast %135 : vector<32x1xf32> to vector<32x128xf32>
    %137 = arith.subf %127, %136 : vector<32x128xf32>
    %138 = arith.mulf %137, %137 : vector<32x128xf32>
    %cst_65 = arith.constant dense<0.000000e+00> : vector<32xf32>
    %139 = vector.multi_reduction <add>, %138, %cst_65 [1] : vector<32x128xf32> to vector<32xf32>
    %140 = vector.shape_cast %139 : vector<32xf32> to vector<32x1xf32>
    %cst_66 = arith.constant 1.280000e+02 : f32
    %141 = vector.broadcast %cst_66 : f32 to vector<32x1xf32>
    %142 = arith.divf %140, %141 : vector<32x1xf32>
    %143 = vector.broadcast %135 : vector<32x1xf32> to vector<32x128xf32>
    %144 = arith.subf %127, %143 : vector<32x128xf32>
    %cst_67 = arith.constant 9.99999996E-13 : f32
    %145 = vector.broadcast %cst_67 : f32 to vector<32x1xf32>
    %146 = arith.addf %142, %145 : vector<32x1xf32>
    %147 = math.rsqrt %146 : vector<32x1xf32>
    %148 = vector.broadcast %147 : vector<32x1xf32> to vector<32x128xf32>
    %149 = arith.mulf %144, %148 : vector<32x128xf32>
    %150 = vector.broadcast %129 : vector<1x128xf32> to vector<32x128xf32>
    %151 = arith.mulf %149, %150 : vector<32x128xf32>
    %152 = vector.broadcast %131 : vector<1x128xf32> to vector<32x128xf32>
    %153 = arith.addf %151, %152 : vector<32x128xf32>
    %c0_68 = arith.constant 0 : index
    %c0_69 = arith.constant 0 : index
    %154 = vector.load %arg18[%c0_68, %c0_69] : memref<32x128xf32, #tpu.memory_space<vmem>>, vector<32x128xf32>
    tpu.vector_store %arg18[%c0_68, %c0_69], %153 {strides = array<i32>} : memref<32x128xf32, #tpu.memory_space<vmem>>, vector<32x128xf32>,
    %c1_i32 = arith.constant 1 : i32
    %155 = arith.cmpi eq, %arg0, %c1_i32 : i32
    %156 = arith.extui %155 : i1 to i32
    %c0_i32_70 = arith.constant 0 : i32
    %157 = arith.cmpi ne, %156, %c0_i32_70 : i32
    scf.if %157 {
      %c0_71 = arith.constant 0 : index
      %c0_72 = arith.constant 0 : index
      %158 = vector.load %arg17[%c0_71, %c0_72] : memref<32x128xf32, #tpu.memory_space<vmem>>, vector<32x128xf32>
      tpu.vector_store %arg17[%c0_71, %c0_72], %153 {strides = array<i32>} : memref<32x128xf32, #tpu.memory_space<vmem>>, vector<32x128xf32>,
    } else {
    }
    return
  }
  func.func @transform_0(%arg0: i32) -> (i32, i32) {
    %c0_i32 = arith.constant 0 : i32
    %c0_i32_0 = arith.constant 0 : i32
    %c0_i32_1 = arith.constant 0 : i32
    return %c0_i32, %c0_i32_0 : i32, i32
  }
  func.func @transform_1(%arg0: i32) -> (i32, i32) {
    %c0_i32 = arith.constant 0 : i32
    %c0_i32_0 = arith.constant 0 : i32
    %c0_i32_1 = arith.constant 0 : i32
    return %c0_i32, %c0_i32_0 : i32, i32
  }
  func.func @transform_2(%arg0: i32) -> (i32, i32) {
    %c0_i32 = arith.constant 0 : i32
    %c0_i32_0 = arith.constant 0 : i32
    %c0_i32_1 = arith.constant 0 : i32
    return %c0_i32, %c0_i32_0 : i32, i32
  }
  func.func @transform_3(%arg0: i32) -> (i32, i32) {
    %c0_i32 = arith.constant 0 : i32
    %c0_i32_0 = arith.constant 0 : i32
    %c0_i32_1 = arith.constant 0 : i32
    return %c0_i32, %c0_i32_0 : i32, i32
  }
  func.func @transform_4(%arg0: i32) -> (i32, i32, i32) {
    %c0_i32 = arith.constant 0 : i32
    %c0_i32_0 = arith.constant 0 : i32
    %c0_i32_1 = arith.constant 0 : i32
    return %arg0, %c0_i32, %c0_i32_0 : i32, i32, i32
  }
  func.func @transform_5(%arg0: i32) -> (i32, i32, i32) {
    %c0_i32 = arith.constant 0 : i32
    %c0_i32_0 = arith.constant 0 : i32
    %c0_i32_1 = arith.constant 0 : i32
    return %arg0, %c0_i32, %c0_i32_0 : i32, i32, i32
  }
  func.func @transform_6(%arg0: i32) -> (i32, i32, i32) {
    %c0_i32 = arith.constant 0 : i32
    %c0_i32_0 = arith.constant 0 : i32
    %c0_i32_1 = arith.constant 0 : i32
    return %arg0, %c0_i32, %c0_i32_0 : i32, i32, i32
  }
  func.func @transform_7(%arg0: i32) -> (i32, i32, i32) {
    %c0_i32 = arith.constant 0 : i32
    %c0_i32_0 = arith.constant 0 : i32
    %c0_i32_1 = arith.constant 0 : i32
    return %arg0, %c0_i32, %c0_i32_0 : i32, i32, i32
  }
  func.func @transform_8(%arg0: i32) -> (i32, i32, i32) {
    %c0_i32 = arith.constant 0 : i32
    %c0_i32_0 = arith.constant 0 : i32
    %c0_i32_1 = arith.constant 0 : i32
    return %arg0, %c0_i32, %c0_i32_0 : i32, i32, i32
  }
  func.func @transform_9(%arg0: i32) -> (i32, i32, i32) {
    %c0_i32 = arith.constant 0 : i32
    %c0_i32_0 = arith.constant 0 : i32
    %c0_i32_1 = arith.constant 0 : i32
    return %arg0, %c0_i32, %c0_i32_0 : i32, i32, i32
  }
  func.func @transform_10(%arg0: i32) -> (i32, i32, i32) {
    %c0_i32 = arith.constant 0 : i32
    %c0_i32_0 = arith.constant 0 : i32
    %c0_i32_1 = arith.constant 0 : i32
    return %arg0, %c0_i32, %c0_i32_0 : i32, i32, i32
  }
  func.func @transform_11(%arg0: i32) -> (i32, i32, i32) {
    %c0_i32 = arith.constant 0 : i32
    %c0_i32_0 = arith.constant 0 : i32
    %c0_i32_1 = arith.constant 0 : i32
    return %arg0, %c0_i32, %c0_i32_0 : i32, i32, i32
  }
  func.func @transform_12(%arg0: i32) -> (i32, i32, i32) {
    %c0_i32 = arith.constant 0 : i32
    %c0_i32_0 = arith.constant 0 : i32
    %c0_i32_1 = arith.constant 0 : i32
    return %arg0, %c0_i32, %c0_i32_0 : i32, i32, i32
  }
  func.func @transform_13(%arg0: i32) -> (i32, i32, i32) {
    %c0_i32 = arith.constant 0 : i32
    %c0_i32_0 = arith.constant 0 : i32
    %c0_i32_1 = arith.constant 0 : i32
    return %arg0, %c0_i32, %c0_i32_0 : i32, i32, i32
  }
  func.func @transform_14(%arg0: i32) -> (i32, i32, i32) {
    %c0_i32 = arith.constant 0 : i32
    %c0_i32_0 = arith.constant 0 : i32
    %c0_i32_1 = arith.constant 0 : i32
    return %arg0, %c0_i32, %c0_i32_0 : i32, i32, i32
  }
  func.func @transform_15(%arg0: i32) -> (i32, i32, i32) {
    %c0_i32 = arith.constant 0 : i32
    %c0_i32_0 = arith.constant 0 : i32
    %c0_i32_1 = arith.constant 0 : i32
    return %arg0, %c0_i32, %c0_i32_0 : i32, i32, i32
  }
  func.func @transform_16(%arg0: i32) -> (i32, i32) {
    %c0_i32 = arith.constant 0 : i32
    %c0_i32_0 = arith.constant 0 : i32
    %c0_i32_1 = arith.constant 0 : i32
    return %c0_i32, %c0_i32_0 : i32, i32
  }
}

</mosaic_0001>

<llo_original>
// kernel: tpu_custom_call.1
$region0: #{tpu_custom_call.1}
  #allocation0 [shape = 'u32[]', space=smem, size = 0x4, offset = 0x4, fixed_abs, tag = 'smem constant byte address 0x4 - core index']
  #allocation1 [shape = 'u32[144,128]{1,0:T(1,128)}', space=vmem, size = 0x12000, scoped, tag = 'internal scratch']
  #allocation2 [shape = 'f32[32,128]{1,0:T(8,128)}', space=vmem, size = 0x4000, scoped, tag = 'scratch operand']
  %s0 = inlined_call_operand.hbm [shape: f32[32,128], index: 0, kind: input, shape index: {}]
  %s1 = inlined_call_operand.hbm [shape: f32[32,32], index: 1, kind: input, shape index: {}]
  %s2 = inlined_call_operand.hbm [shape: f32[1,128], index: 2, kind: input, shape index: {}]
  %s3 = inlined_call_operand.hbm [shape: f32[1,128], index: 3, kind: input, shape index: {}]
  %s4 = inlined_call_operand.hbm [shape: bf16[2,128,384], index: 4, kind: input, shape index: {}]
  %s5 = inlined_call_operand.vmem [shape: f32[2,1,384], index: 5, kind: input, shape index: {}]
  %s6 = inlined_call_operand.hbm [shape: bf16[2,128,128], index: 6, kind: input, shape index: {}]
  %s7 = inlined_call_operand.vmem [shape: f32[2,1,128], index: 7, kind: input, shape index: {}]
  %s8 = inlined_call_operand.vmem [shape: f32[2,1,128], index: 8, kind: input, shape index: {}]
  %s9 = inlined_call_operand.vmem [shape: f32[2,1,128], index: 9, kind: input, shape index: {}]
  %s10 = inlined_call_operand.hbm [shape: bf16[2,128,256], index: 10, kind: input, shape index: {}]
  %s11 = inlined_call_operand.vmem [shape: f32[2,1,256], index: 11, kind: input, shape index: {}]
  %s12 = inlined_call_operand.hbm [shape: bf16[2,256,128], index: 12, kind: input, shape index: {}]
  %s13 = inlined_call_operand.vmem [shape: f32[2,1,128], index: 13, kind: input, shape index: {}]
  %s14 = inlined_call_operand.vmem [shape: f32[2,1,128], index: 14, kind: input, shape index: {}]
  %s15 = inlined_call_operand.vmem [shape: f32[2,1,128], index: 15, kind: input, shape index: {}]
  %s16 = inlined_call_operand.hbm [shape: f32[32,128], index: 16, kind: output, shape index: {}]
  %s17 = sld [smem:[#allocation0]]
  $region137: #{tpu_custom_call.1} parent=0
    _
  %s19 = ssub.s32 1, %s17
  %s20 = scalar_select 0, %s19, %s17
  $region1: #{tpu_custom_call.1} parent=0
    #allocation3 [shape = 'u8[16384]{0}', space=vmem, size = 0x4000, scoped, tag = 'input window, operand 0, single buffered']
    #allocation4 [shape = 's32[2]{0}', space=sflag, size = 0x8, scoped, tag = 'scoped memory for tpu_custom_call.1']
    #allocation5 [shape = 's32[2]{0}', space=sflag, size = 0x8, scoped, tag = 'scoped memory for tpu_custom_call.1']
    #allocation6 [shape = 'u8[16384]{0}', space=vmem, size = 0x4000, scoped, tag = 'input window, operand 1, single buffered']
    #allocation7 [shape = 's32[1]{0}', space=sflag, size = 0x4, scoped, tag = 'scoped memory for tpu_custom_call.1']
    #allocation8 [shape = 'u8[512]{0}', space=vmem, size = 0x400, scoped, tag = 'input window, operand 2, single buffered']
    #allocation9 [shape = 'u8[512]{0}', space=vmem, size = 0x400, scoped, tag = 'input window, operand 3, single buffered']
    #allocation10 [shape = 's32[1]{0}', space=sflag, size = 0x4, scoped, tag = 'scoped memory for tpu_custom_call.1']
    #allocation11 [shape = 'u8[196608]{0}', space=vmem, size = 0x30000, scoped, tag = 'input window, operand 4']
    #allocation12 [shape = 'u8[65536]{0}', space=vmem, size = 0x10000, scoped, tag = 'input window, operand 6']
    #allocation13 [shape = 'u8[131072]{0}', space=vmem, size = 0x20000, scoped, tag = 'input window, operand 10']
    #allocation14 [shape = 'u8[131072]{0}', space=vmem, size = 0x20000, scoped, tag = 'input window, operand 12']
    #allocation15 [shape = 'u8[16384]{0}', space=vmem, size = 0x4000, scoped, tag = 'output window, operand 0, single buffered']
    %21 = vsyncpa [#allocation4], 0
    %22 = vsyncpa [#allocation7], 0
    %23 = vsyncpa [#allocation10], 0
    %24 = vsyncpa [#allocation5], 0
    loop: start=0, step=1, limit=4
    $region2: #{tpu_custom_call.1} parent=1 // loop_pre_header
      _
    $region3: #{tpu_custom_call.1} parent=1 // loop_header
      %s26 = sphi 0, %s30
      %p27 = scmp.ge.s32.totalorder %s26, 4
      %s34 = sphi 0, %s34
      %s36 = sphi 0, %s34
      %s37 = sphi 0, %s36
      %s51 = sphi 0, %s37
      %s55 = sphi 0, %s55
      %s57 = sphi 0, %s55
      %s58 = sphi 0, %s57
      %s72 = sphi 0, %s58
      %s76 = sphi 0, %s76
      %s78 = sphi 0, %s76
      %s79 = sphi 0, %s78
      %s93 = sphi 0, %s79
      %s97 = sphi 0, %s97
      %s99 = sphi 0, %s97
      %s100 = sphi 0, %s99
      %s114 = sphi 0, %s100
      %s120 = sphi 0, %s122
      %s123 = sphi 0, %s120
      %s124 = sphi 0, %s123
      %s140 = sphi 0, %s124
      %s146 = sphi 0, %s148
      %s149 = sphi 0, %s146
      %s150 = sphi 0, %s149
      %s166 = sphi 0, %s150
      %s172 = sphi 0, %s174
      %s175 = sphi 0, %s172
      %s176 = sphi 0, %s175
      %s192 = sphi 0, %s176
      %s198 = sphi 0, %s200
      %s201 = sphi 0, %s198
      %s202 = sphi 0, %s201
      %s218 = sphi 0, %s202
      %s224 = sphi 0, %s226
      %s227 = sphi 0, %s224
      %s228 = sphi 0, %s227
      %s244 = sphi 0, %s228
      %s250 = sphi 0, %s252
      %s253 = sphi 0, %s250
      %s254 = sphi 0, %s253
      %s270 = sphi 0, %s254
      %s276 = sphi 0, %s278
      %s279 = sphi 0, %s276
      %s280 = sphi 0, %s279
      %s296 = sphi 0, %s280
      %s302 = sphi 0, %s304
      %s305 = sphi 0, %s302
      %s306 = sphi 0, %s305
      %s322 = sphi 0, %s306
      %s328 = sphi 0, %s330
      %s331 = sphi 0, %s328
      %s332 = sphi 0, %s331
      %s348 = sphi 0, %s332
      %s354 = sphi 0, %s356
      %s357 = sphi 0, %s354
      %s358 = sphi 0, %s357
      %s374 = sphi 0, %s358
      %s380 = sphi 0, %s382
      %s383 = sphi 0, %s380
      %s384 = sphi 0, %s383
      %s400 = sphi 0, %s384
      %s406 = sphi 0, %s408
      %s409 = sphi 0, %s406
      %s410 = sphi 0, %s409
      %s426 = sphi 0, %s410
      %s430 = sphi 0, %s430
      %s432 = sphi 0, %s430
      %s433 = sphi 0, %s432
      %s447 = sphi 0, %s433
    $region4: #{tpu_custom_call.1} parent=1 // loop_header_branch
      %29 = sbr.rel (%p27) target = $region8
    $region5: #{tpu_custom_call.1} parent=1 // loop_body
      %s31 = ssub.s32 %s26, 1
      %s32 = ssub.s32 %s26, 2
      %s33 = sadd.s32 %s26, 1
      %s35 = sadd.s32 %s34, 1
      %p38 = scmp.eq.s32.totalorder %s26, 1
      %p39 = scmp.ne.s32.totalorder %s34, %s36
      %p40 = scmp.eq.s32.totalorder %s26, 0
      %p41 = por %p39, %p40
      %p42 = scmp.ne.s32.totalorder %s34, %s36
      %p43 = scmp.eq.s32.totalorder %s31, 1
      %p44 = por %p42, %p43
      %p45 = scmp.ne.s32.totalorder %s36, %s37
      %p46 = scmp.eq.s32.totalorder %s31, 0
      %p47 = por %p45, %p46
      %p48 = scmp.ne.s32.totalorder %s36, %s37
      %p49 = scmp.eq.s32.totalorder %s32, 1
      %p50 = por %p48, %p49
      %p52 = scmp.ne.s32.totalorder %s37, %s51
      %p53 = scmp.eq.s32.totalorder %s32, 0
      %p54 = por %p52, %p53
      %s56 = sadd.s32 %s55, 1
      %p59 = scmp.eq.s32.totalorder %s26, 1
      %p60 = scmp.ne.s32.totalorder %s55, %s57
      %p61 = scmp.eq.s32.totalorder %s26, 0
      %p62 = por %p60, %p61
      %p63 = scmp.ne.s32.totalorder %s55, %s57
      %p64 = scmp.eq.s32.totalorder %s31, 1
      %p65 = por %p63, %p64
      %p66 = scmp.ne.s32.totalorder %s57, %s58
      %p67 = scmp.eq.s32.totalorder %s31, 0
      %p68 = por %p66, %p67
      %p69 = scmp.ne.s32.totalorder %s57, %s58
      %p70 = scmp.eq.s32.totalorder %s32, 1
      %p71 = por %p69, %p70
      %p73 = scmp.ne.s32.totalorder %s58, %s72
      %p74 = scmp.eq.s32.totalorder %s32, 0
      %p75 = por %p73, %p74
      %s77 = sadd.s32 %s76, 1
      %p80 = scmp.eq.s32.totalorder %s26, 1
      %p81 = scmp.ne.s32.totalorder %s76, %s78
      %p82 = scmp.eq.s32.totalorder %s26, 0
      %p83 = por %p81, %p82
      %p84 = scmp.ne.s32.totalorder %s76, %s78
      %p85 = scmp.eq.s32.totalorder %s31, 1
      %p86 = por %p84, %p85
      %p87 = scmp.ne.s32.totalorder %s78, %s79
      %p88 = scmp.eq.s32.totalorder %s31, 0
      %p89 = por %p87, %p88
      %p90 = scmp.ne.s32.totalorder %s78, %s79
      %p91 = scmp.eq.s32.totalorder %s32, 1
      %p92 = por %p90, %p91
      %p94 = scmp.ne.s32.totalorder %s79, %s93
      %p95 = scmp.eq.s32.totalorder %s32, 0
      %p96 = por %p94, %p95
      %s98 = sadd.s32 %s97, 1
      %p101 = scmp.eq.s32.totalorder %s26, 1
      %p102 = scmp.ne.s32.totalorder %s97, %s99
      %p103 = scmp.eq.s32.totalorder %s26, 0
      %p104 = por %p102, %p103
      %p105 = scmp.ne.s32.totalorder %s97, %s99
      %p106 = scmp.eq.s32.totalorder %s31, 1
      %p107 = por %p105, %p106
      %p108 = scmp.ne.s32.totalorder %s99, %s100
      %p109 = scmp.eq.s32.totalorder %s31, 0
      %p110 = por %p108, %p109
      %p111 = scmp.ne.s32.totalorder %s99, %s100
      %p112 = scmp.eq.s32.totalorder %s32, 1
      %p113 = por %p111, %p112
      %p115 = scmp.ne.s32.totalorder %s100, %s114
      %p116 = scmp.eq.s32.totalorder %s32, 0
      %p117 = por %p115, %p116
      %s118 = ssub.s32 %s26, %s33
      %p119 = scmp.eq.s32.totalorder %s118, 0
      %s121 = sadd.s32 %s120, 1
      %s122 = scalar_select %p119, %s120, %s121
      %p125 = pneg %p119
      %p126 = scmp.eq.s32.totalorder %s26, 1
      %p127 = por %p125, %p126
      %p128 = scmp.ne.s32.totalorder %s120, %s123
      %p129 = scmp.eq.s32.totalorder %s26, 0
      %p130 = por %p128, %p129
      %p131 = scmp.ne.s32.totalorder %s120, %s123
      %p132 = scmp.eq.s32.totalorder %s31, 1
      %p133 = por %p131, %p132
      %p134 = scmp.ne.s32.totalorder %s123, %s124
      %p135 = scmp.eq.s32.totalorder %s31, 0
      %p136 = por %p134, %p135
      %p137 = scmp.ne.s32.totalorder %s123, %s124
      %p138 = scmp.eq.s32.totalorder %s32, 1
      %p139 = por %p137, %p138
      %p141 = scmp.ne.s32.totalorder %s124, %s140
      %p142 = scmp.eq.s32.totalorder %s32, 0
      %p143 = por %p141, %p142
      %s144 = ssub.s32 %s26, %s33
      %p145 = scmp.eq.s32.totalorder %s144, 0
      %s147 = sadd.s32 %s146, 1
      %s148 = scalar_select %p145, %s146, %s147
      %p151 = pneg %p145
      %p152 = scmp.eq.s32.totalorder %s26, 1
      %p153 = por %p151, %p152
      %p154 = scmp.ne.s32.totalorder %s146, %s149
      %p155 = scmp.eq.s32.totalorder %s26, 0
      %p156 = por %p154, %p155
      %p157 = scmp.ne.s32.totalorder %s146, %s149
      %p158 = scmp.eq.s32.totalorder %s31, 1
      %p159 = por %p157, %p158
      %p160 = scmp.ne.s32.totalorder %s149, %s150
      %p161 = scmp.eq.s32.totalorder %s31, 0
      %p162 = por %p160, %p161
      %p163 = scmp.ne.s32.totalorder %s149, %s150
      %p164 = scmp.eq.s32.totalorder %s32, 1
      %p165 = por %p163, %p164
      %p167 = scmp.ne.s32.totalorder %s150, %s166
      %p168 = scmp.eq.s32.totalorder %s32, 0
      %p169 = por %p167, %p168
      %s170 = ssub.s32 %s26, %s33
      %p171 = scmp.eq.s32.totalorder %s170, 0
      %s173 = sadd.s32 %s172, 1
      %s174 = scalar_select %p171, %s172, %s173
      %p177 = pneg %p171
      %p178 = scmp.eq.s32.totalorder %s26, 1
      %p179 = por %p177, %p178
      %p180 = scmp.ne.s32.totalorder %s172, %s175
      %p181 = scmp.eq.s32.totalorder %s26, 0
      %p182 = por %p180, %p181
      %p183 = scmp.ne.s32.totalorder %s172, %s175
      %p184 = scmp.eq.s32.totalorder %s31, 1
      %p185 = por %p183, %p184
      %p186 = scmp.ne.s32.totalorder %s175, %s176
      %p187 = scmp.eq.s32.totalorder %s31, 0
      %p188 = por %p186, %p187
      %p189 = scmp.ne.s32.totalorder %s175, %s176
      %p190 = scmp.eq.s32.totalorder %s32, 1
      %p191 = por %p189, %p190
      %p193 = scmp.ne.s32.totalorder %s176, %s192
      %p194 = scmp.eq.s32.totalorder %s32, 0
      %p195 = por %p193, %p194
      %s196 = ssub.s32 %s26, %s33
      %p197 = scmp.eq.s32.totalorder %s196, 0
      %s199 = sadd.s32 %s198, 1
      %s200 = scalar_select %p197, %s198, %s199
      %p203 = pneg %p197
      %p204 = scmp.eq.s32.totalorder %s26, 1
      %p205 = por %p203, %p204
      %p206 = scmp.ne.s32.totalorder %s198, %s201
      %p207 = scmp.eq.s32.totalorder %s26, 0
      %p208 = por %p206, %p207
      %p209 = scmp.ne.s32.totalorder %s198, %s201
      %p210 = scmp.eq.s32.totalorder %s31, 1
      %p211 = por %p209, %p210
      %p212 = scmp.ne.s32.totalorder %s201, %s202
      %p213 = scmp.eq.s32.totalorder %s31, 0
      %p214 = por %p212, %p213
      %p215 = scmp.ne.s32.totalorder %s201, %s202
      %p216 = scmp.eq.s32.totalorder %s32, 1
      %p217 = por %p215, %p216
      %p219 = scmp.ne.s32.totalorder %s202, %s218
      %p220 = scmp.eq.s32.totalorder %s32, 0
      %p221 = por %p219, %p220
      %s222 = ssub.s32 %s26, %s33
      %p223 = scmp.eq.s32.totalorder %s222, 0
      %s225 = sadd.s32 %s224, 1
      %s226 = scalar_select %p223, %s224, %s225
      %p229 = pneg %p223
      %p230 = scmp.eq.s32.totalorder %s26, 1
      %p231 = por %p229, %p230
      %p232 = scmp.ne.s32.totalorder %s224, %s227
      %p233 = scmp.eq.s32.totalorder %s26, 0
      %p234 = por %p232, %p233
      %p235 = scmp.ne.s32.totalorder %s224, %s227
      %p236 = scmp.eq.s32.totalorder %s31, 1
      %p237 = por %p235, %p236
      %p238 = scmp.ne.s32.totalorder %s227, %s228
      %p239 = scmp.eq.s32.totalorder %s31, 0
      %p240 = por %p238, %p239
      %p241 = scmp.ne.s32.totalorder %s227, %s228
      %p242 = scmp.eq.s32.totalorder %s32, 1
      %p243 = por %p241, %p242
      %p245 = scmp.ne.s32.totalorder %s228, %s244
      %p246 = scmp.eq.s32.totalorder %s32, 0
      %p247 = por %p245, %p246
      %s248 = ssub.s32 %s26, %s33
      %p249 = scmp.eq.s32.totalorder %s248, 0
      %s251 = sadd.s32 %s250, 1
      %s252 = scalar_select %p249, %s250, %s251
      %p255 = pneg %p249
      %p256 = scmp.eq.s32.totalorder %s26, 1
      %p257 = por %p255, %p256
      %p258 = scmp.ne.s32.totalorder %s250, %s253
      %p259 = scmp.eq.s32.totalorder %s26, 0
      %p260 = por %p258, %p259
      %p261 = scmp.ne.s32.totalorder %s250, %s253
      %p262 = scmp.eq.s32.totalorder %s31, 1
      %p263 = por %p261, %p262
      %p264 = scmp.ne.s32.totalorder %s253, %s254
      %p265 = scmp.eq.s32.totalorder %s31, 0
      %p266 = por %p264, %p265
      %p267 = scmp.ne.s32.totalorder %s253, %s254
      %p268 = scmp.eq.s32.totalorder %s32, 1
      %p269 = por %p267, %p268
      %p271 = scmp.ne.s32.totalorder %s254, %s270
      %p272 = scmp.eq.s32.totalorder %s32, 0
      %p273 = por %p271, %p272
      %s274 = ssub.s32 %s26, %s33
      %p275 = scmp.eq.s32.totalorder %s274, 0
      %s277 = sadd.s32 %s276, 1
      %s278 = scalar_select %p275, %s276, %s277
      %p281 = pneg %p275
      %p282 = scmp.eq.s32.totalorder %s26, 1
      %p283 = por %p281, %p282
      %p284 = scmp.ne.s32.totalorder %s276, %s279
      %p285 = scmp.eq.s32.totalorder %s26, 0
      %p286 = por %p284, %p285
      %p287 = scmp.ne.s32.totalorder %s276, %s279
      %p288 = scmp.eq.s32.totalorder %s31, 1
      %p289 = por %p287, %p288
      %p290 = scmp.ne.s32.totalorder %s279, %s280
      %p291 = scmp.eq.s32.totalorder %s31, 0
      %p292 = por %p290, %p291
      %p293 = scmp.ne.s32.totalorder %s279, %s280
      %p294 = scmp.eq.s32.totalorder %s32, 1
      %p295 = por %p293, %p294
      %p297 = scmp.ne.s32.totalorder %s280, %s296
      %p298 = scmp.eq.s32.totalorder %s32, 0
      %p299 = por %p297, %p298
      %s300 = ssub.s32 %s26, %s33
      %p301 = scmp.eq.s32.totalorder %s300, 0
      %s303 = sadd.s32 %s302, 1
      %s304 = scalar_select %p301, %s302, %s303
      %p307 = pneg %p301
      %p308 = scmp.eq.s32.totalorder %s26, 1
      %p309 = por %p307, %p308
      %p310 = scmp.ne.s32.totalorder %s302, %s305
      %p311 = scmp.eq.s32.totalorder %s26, 0
      %p312 = por %p310, %p311
      %p313 = scmp.ne.s32.totalorder %s302, %s305
      %p314 = scmp.eq.s32.totalorder %s31, 1
      %p315 = por %p313, %p314
      %p316 = scmp.ne.s32.totalorder %s305, %s306
      %p317 = scmp.eq.s32.totalorder %s31, 0
      %p318 = por %p316, %p317
      %p319 = scmp.ne.s32.totalorder %s305, %s306
      %p320 = scmp.eq.s32.totalorder %s32, 1
      %p321 = por %p319, %p320
      %p323 = scmp.ne.s32.totalorder %s306, %s322
      %p324 = scmp.eq.s32.totalorder %s32, 0
      %p325 = por %p323, %p324
      %s326 = ssub.s32 %s26, %s33
      %p327 = scmp.eq.s32.totalorder %s326, 0
      %s329 = sadd.s32 %s328, 1
      %s330 = scalar_select %p327, %s328, %s329
      %p333 = pneg %p327
      %p334 = scmp.eq.s32.totalorder %s26, 1
      %p335 = por %p333, %p334
      %p336 = scmp.ne.s32.totalorder %s328, %s331
      %p337 = scmp.eq.s32.totalorder %s26, 0
      %p338 = por %p336, %p337
      %p339 = scmp.ne.s32.totalorder %s328, %s331
      %p340 = scmp.eq.s32.totalorder %s31, 1
      %p341 = por %p339, %p340
      %p342 = scmp.ne.s32.totalorder %s331, %s332
      %p343 = scmp.eq.s32.totalorder %s31, 0
      %p344 = por %p342, %p343
      %p345 = scmp.ne.s32.totalorder %s331, %s332
      %p346 = scmp.eq.s32.totalorder %s32, 1
      %p347 = por %p345, %p346
      %p349 = scmp.ne.s32.totalorder %s332, %s348
      %p350 = scmp.eq.s32.totalorder %s32, 0
      %p351 = por %p349, %p350
      %s352 = ssub.s32 %s26, %s33
      %p353 = scmp.eq.s32.totalorder %s352, 0
      %s355 = sadd.s32 %s354, 1
      %s356 = scalar_select %p353, %s354, %s355
      %p359 = pneg %p353
      %p360 = scmp.eq.s32.totalorder %s26, 1
      %p361 = por %p359, %p360
      %p362 = scmp.ne.s32.totalorder %s354, %s357
      %p363 = scmp.eq.s32.totalorder %s26, 0
      %p364 = por %p362, %p363
      %p365 = scmp.ne.s32.totalorder %s354, %s357
      %p366 = scmp.eq.s32.totalorder %s31, 1
      %p367 = por %p365, %p366
      %p368 = scmp.ne.s32.totalorder %s357, %s358
      %p369 = scmp.eq.s32.totalorder %s31, 0
      %p370 = por %p368, %p369
      %p371 = scmp.ne.s32.totalorder %s357, %s358
      %p372 = scmp.eq.s32.totalorder %s32, 1
      %p373 = por %p371, %p372
      %p375 = scmp.ne.s32.totalorder %s358, %s374
      %p376 = scmp.eq.s32.totalorder %s32, 0
      %p377 = por %p375, %p376
      %s378 = ssub.s32 %s26, %s33
      %p379 = scmp.eq.s32.totalorder %s378, 0
      %s381 = sadd.s32 %s380, 1
      %s382 = scalar_select %p379, %s380, %s381
      %p385 = pneg %p379
      %p386 = scmp.eq.s32.totalorder %s26, 1
      %p387 = por %p385, %p386
      %p388 = scmp.ne.s32.totalorder %s380, %s383
      %p389 = scmp.eq.s32.totalorder %s26, 0
      %p390 = por %p388, %p389
      %p391 = scmp.ne.s32.totalorder %s380, %s383
      %p392 = scmp.eq.s32.totalorder %s31, 1
      %p393 = por %p391, %p392
      %p394 = scmp.ne.s32.totalorder %s383, %s384
      %p395 = scmp.eq.s32.totalorder %s31, 0
      %p396 = por %p394, %p395
      %p397 = scmp.ne.s32.totalorder %s383, %s384
      %p398 = scmp.eq.s32.totalorder %s32, 1
      %p399 = por %p397, %p398
      %p401 = scmp.ne.s32.totalorder %s384, %s400
      %p402 = scmp.eq.s32.totalorder %s32, 0
      %p403 = por %p401, %p402
      %s404 = ssub.s32 %s26, %s33
      %p405 = scmp.eq.s32.totalorder %s404, 0
      %s407 = sadd.s32 %s406, 1
      %s408 = scalar_select %p405, %s406, %s407
      %p411 = pneg %p405
      %p412 = scmp.eq.s32.totalorder %s26, 1
      %p413 = por %p411, %p412
      %p414 = scmp.ne.s32.totalorder %s406, %s409
      %p415 = scmp.eq.s32.totalorder %s26, 0
      %p416 = por %p414, %p415
      %p417 = scmp.ne.s32.totalorder %s406, %s409
      %p418 = scmp.eq.s32.totalorder %s31, 1
      %p419 = por %p417, %p418
      %p420 = scmp.ne.s32.totalorder %s409, %s410
      %p421 = scmp.eq.s32.totalorder %s31, 0
      %p422 = por %p420, %p421
      %p423 = scmp.ne.s32.totalorder %s409, %s410
      %p424 = scmp.eq.s32.totalorder %s32, 1
      %p425 = por %p423, %p424
      %p427 = scmp.ne.s32.totalorder %s410, %s426
      %p428 = scmp.eq.s32.totalorder %s32, 0
      %p429 = por %p427, %p428
      %s431 = sadd.s32 %s430, 1
      %p434 = scmp.eq.s32.totalorder %s26, 1
      %p435 = scmp.ne.s32.totalorder %s430, %s432
      %p436 = scmp.eq.s32.totalorder %s26, 0
      %p437 = por %p435, %p436
      %p438 = scmp.ne.s32.totalorder %s430, %s432
      %p439 = scmp.eq.s32.totalorder %s31, 1
      %p440 = por %p438, %p439
      %p441 = scmp.ne.s32.totalorder %s432, %s433
      %p442 = scmp.eq.s32.totalorder %s31, 0
      %p443 = por %p441, %p442
      %p444 = scmp.ne.s32.totalorder %s432, %s433
      %p445 = scmp.eq.s32.totalorder %s32, 1
      %p446 = por %p444, %p445
      %p448 = scmp.ne.s32.totalorder %s433, %s447
      %p449 = scmp.eq.s32.totalorder %s32, 0
      %p450 = por %p448, %p449
      %p451 = scmp.le.s32.totalorder 1, %s26
      %p452 = scmp.lt.s32.totalorder %s26, 3
      %p453 = pnand %p451, %p452
      %p454 = pneg %p453
      // Predicated region
      $region9: #{tpu_custom_call.1} parent=5 // pred_check
        _
      $region10: #{tpu_custom_call.1} parent=5 // pred_check_branch
        %456 = sbr.rel (%p453) target = $region12
      $region11: #{tpu_custom_call.1} parent=5 // pred_region
        %s457 = ssub.s32 %s26, 1
        // Predicated region
        $region13: #{tpu_custom_call.1} parent=11 // pred_check
          %p458 = pneg %p47
        $region14: #{tpu_custom_call.1} parent=11 // pred_check_branch
          %460 = sbr.rel (%p458) target = $region16
        $region15: #{tpu_custom_call.1} parent=11 // pred_region
          %s462 = ssub.s32 512, 512
          %463 = vsyncadd [#allocation4], %s462
          %s464 = sshll.u32 [#allocation3], 4
          %s465 = int_to_ptr.vmem [resolvable:$true] %s464
          %470 = dma.hbm_to_vmem [thread:$0]  %s0, 512, %s465, [#allocation4], 128, 128, 8
        $region16: #{tpu_custom_call.1} parent=11 // pred_fallthru
          _
        // Predicated region
        $region17: #{tpu_custom_call.1} parent=11 // pred_check
          %p471 = pneg %p68
        $region18: #{tpu_custom_call.1} parent=11 // pred_check_branch
          %473 = sbr.rel (%p471) target = $region20
        $region19: #{tpu_custom_call.1} parent=11 // pred_region
          %s475 = ssub.s32 512, 512
          %476 = vsyncadd [#allocation7], %s475
          %s477 = sshll.u32 [#allocation6], 4
          %s478 = int_to_ptr.vmem [resolvable:$true] %s477
          %483 = dma.hbm_to_vmem [thread:$0]  %s1, 512, %s478, [#allocation7], 128, 128, 8
        $region20: #{tpu_custom_call.1} parent=11 // pred_fallthru
          _
        // Predicated region
        $region21: #{tpu_custom_call.1} parent=11 // pred_check
          %p484 = pneg %p89
        $region22: #{tpu_custom_call.1} parent=11 // pred_check_branch
          %486 = sbr.rel (%p484) target = $region24
        $region23: #{tpu_custom_call.1} parent=11 // pred_region
          %s488 = ssub.s32 16, 16
          %489 = vsyncadd [#allocation7], %s488
          %s491 = sshll.u32 [#allocation8], 4
          %s492 = int_to_ptr.vmem [resolvable:$true] %s491
          %494 = dma.hbm_to_vmem [thread:$0]  %s2, 16, %s492, [#allocation7]
        $region24: #{tpu_custom_call.1} parent=11 // pred_fallthru
          _
        // Predicated region
        $region25: #{tpu_custom_call.1} parent=11 // pred_check
          %p495 = pneg %p110
        $region26: #{tpu_custom_call.1} parent=11 // pred_check_branch
          %497 = sbr.rel (%p495) target = $region28
        $region27: #{tpu_custom_call.1} parent=11 // pred_region
          %s499 = ssub.s32 16, 16
          %500 = vsyncadd [#allocation10], %s499
          %s502 = sshll.u32 [#allocation9], 4
          %s503 = int_to_ptr.vmem [resolvable:$true] %s502
          %505 = dma.hbm_to_vmem [thread:$0]  %s3, 16, %s503, [#allocation10]
        $region28: #{tpu_custom_call.1} parent=11 // pred_fallthru
          _
      $region12: #{tpu_custom_call.1} parent=5 // pred_fallthru
        _
      %p506 = scmp.lt.s32.totalorder %s26, 2
      // Predicated region
      $region29: #{tpu_custom_call.1} parent=5 // pred_check
        %p507 = pneg %p506
      $region30: #{tpu_custom_call.1} parent=5 // pred_check_branch
        %509 = sbr.rel (%p507) target = $region32
      $region31: #{tpu_custom_call.1} parent=5 // pred_region
        // Predicated region
        $region33: #{tpu_custom_call.1} parent=31 // pred_check
          %p510 = pneg %p130
        $region34: #{tpu_custom_call.1} parent=31 // pred_check_branch
          %512 = sbr.rel (%p510) target = $region36
        $region35: #{tpu_custom_call.1} parent=31 // pred_region
          %s513 = sand.u32 %s26, 1
          %s514 = scalar_lea.sflag [#allocation4], %s513
          %s515 = sand.u32 %s120, 1
          %s516 = smul.addr %s515, 192
          %s517 = scalar_lea.vmem [#allocation11], %s516
          %s519 = ssub.s32 3072, 3072
          %520 = vsyncadd %s514, %s519
          %s521 = smul.addr %s26, 48
          %s522 = smul.addr %s521, 64
          %s523 = scalar_lea.hbm %s4, %s522
          %s524 = sshll.u32 %s517, 4
          %s525 = int_to_ptr.vmem [resolvable:$true] %s524
          %530 = dma.hbm_to_vmem [thread:$0]  %s523, 3072, %s525, %s514, 192, 192, 12
        $region36: #{tpu_custom_call.1} parent=31 // pred_fallthru
          _
        // Predicated region
        $region37: #{tpu_custom_call.1} parent=31 // pred_check
          %p531 = pneg %p156
        $region38: #{tpu_custom_call.1} parent=31 // pred_check_branch
          %533 = sbr.rel (%p531) target = $region40
        $region39: #{tpu_custom_call.1} parent=31 // pred_region
          %p534 = scmp.lt.s32.totalorder %s26, 1
          %s535 = scalar_select %p534, %s26, 1
          %s536 = smul.addr %s535, 3
          %s537 = scalar_lea.vmem %s5, %s536
        $region40: #{tpu_custom_call.1} parent=31 // pred_fallthru
          _
        // Predicated region
        $region41: #{tpu_custom_call.1} parent=31 // pred_check
          %p538 = pneg %p182
        $region42: #{tpu_custom_call.1} parent=31 // pred_check_branch
          %540 = sbr.rel (%p538) target = $region44
        $region43: #{tpu_custom_call.1} parent=31 // pred_region
          %s541 = sand.u32 %s26, 1
          %s542 = scalar_lea.sflag [#allocation4], %s541
          %s543 = sand.u32 %s172, 1
          %s544 = smul.addr %s543, 64
          %s545 = scalar_lea.vmem [#allocation12], %s544
          %s547 = ssub.s32 1024, 1024
          %548 = vsyncadd %s542, %s547
          %s549 = smul.addr %s26, 16
          %s550 = smul.addr %s549, 64
          %s551 = scalar_lea.hbm %s6, %s550
          %s552 = sshll.u32 %s545, 4
          %s553 = int_to_ptr.vmem [resolvable:$true] %s552
          %558 = dma.hbm_to_vmem [thread:$0]  %s551, 1024, %s553, %s542, 64, 64, 4
        $region44: #{tpu_custom_call.1} parent=31 // pred_fallthru
          _
        // Predicated region
        $region45: #{tpu_custom_call.1} parent=31 // pred_check
          %p559 = pneg %p208
        $region46: #{tpu_custom_call.1} parent=31 // pred_check_branch
          %561 = sbr.rel (%p559) target = $region48
        $region47: #{tpu_custom_call.1} parent=31 // pred_region
          %p562 = scmp.lt.s32.totalorder %s26, 1
          %s563 = scalar_select %p562, %s26, 1
          %s564 = scalar_lea.vmem %s7, %s563
        $region48: #{tpu_custom_call.1} parent=31 // pred_fallthru
          _
        // Predicated region
        $region49: #{tpu_custom_call.1} parent=31 // pred_check
          %p565 = pneg %p234
        $region50: #{tpu_custom_call.1} parent=31 // pred_check_branch
          %567 = sbr.rel (%p565) target = $region52
        $region51: #{tpu_custom_call.1} parent=31 // pred_region
          %p568 = scmp.lt.s32.totalorder %s26, 1
          %s569 = scalar_select %p568, %s26, 1
          %s570 = scalar_lea.vmem %s8, %s569
        $region52: #{tpu_custom_call.1} parent=31 // pred_fallthru
          _
        // Predicated region
        $region53: #{tpu_custom_call.1} parent=31 // pred_check
          %p571 = pneg %p260
        $region54: #{tpu_custom_call.1} parent=31 // pred_check_branch
          %573 = sbr.rel (%p571) target = $region56
        $region55: #{tpu_custom_call.1} parent=31 // pred_region
          %p574 = scmp.lt.s32.totalorder %s26, 1
          %s575 = scalar_select %p574, %s26, 1
          %s576 = scalar_lea.vmem %s9, %s575
        $region56: #{tpu_custom_call.1} parent=31 // pred_fallthru
          _
        // Predicated region
        $region57: #{tpu_custom_call.1} parent=31 // pred_check
          %p577 = pneg %p286
        $region58: #{tpu_custom_call.1} parent=31 // pred_check_branch
          %579 = sbr.rel (%p577) target = $region60
        $region59: #{tpu_custom_call.1} parent=31 // pred_region
          %s580 = sand.u32 %s26, 1
          %s581 = scalar_lea.sflag [#allocation4], %s580
          %s582 = sand.u32 %s276, 1
          %s583 = smul.addr %s582, 128
          %s584 = scalar_lea.vmem [#allocation13], %s583
          %s586 = ssub.s32 2048, 2048
          %587 = vsyncadd %s581, %s586
          %s588 = smul.addr %s26, 32
          %s589 = smul.addr %s588, 64
          %s590 = scalar_lea.hbm %s10, %s589
          %s591 = sshll.u32 %s584, 4
          %s592 = int_to_ptr.vmem [resolvable:$true] %s591
          %597 = dma.hbm_to_vmem [thread:$0]  %s590, 2048, %s592, %s581, 128, 128, 8
        $region60: #{tpu_custom_call.1} parent=31 // pred_fallthru
          _
        // Predicated region
        $region61: #{tpu_custom_call.1} parent=31 // pred_check
          %p598 = pneg %p312
        $region62: #{tpu_custom_call.1} parent=31 // pred_check_branch
          %600 = sbr.rel (%p598) target = $region64
        $region63: #{tpu_custom_call.1} parent=31 // pred_region
          %p601 = scmp.lt.s32.totalorder %s26, 1
          %s602 = scalar_select %p601, %s26, 1
          %s603 = smul.addr %s602, 2
          %s604 = scalar_lea.vmem %s11, %s603
        $region64: #{tpu_custom_call.1} parent=31 // pred_fallthru
          _
        // Predicated region
        $region65: #{tpu_custom_call.1} parent=31 // pred_check
          %p605 = pneg %p338
        $region66: #{tpu_custom_call.1} parent=31 // pred_check_branch
          %607 = sbr.rel (%p605) target = $region68
        $region67: #{tpu_custom_call.1} parent=31 // pred_region
          %s608 = sand.u32 %s26, 1
          %s609 = scalar_lea.sflag [#allocation4], %s608
          %s610 = sand.u32 %s328, 1
          %s611 = smul.addr %s610, 128
          %s612 = scalar_lea.vmem [#allocation14], %s611
          %s614 = ssub.s32 2048, 2048
          %615 = vsyncadd %s609, %s614
          %s616 = smul.addr %s26, 32
          %s617 = smul.addr %s616, 64
          %s618 = scalar_lea.hbm %s12, %s617
          %s619 = sshll.u32 %s612, 4
          %s620 = int_to_ptr.vmem [resolvable:$true] %s619
          %625 = dma.hbm_to_vmem [thread:$0]  %s618, 2048, %s620, %s609, 64, 64, 4
        $region68: #{tpu_custom_call.1} parent=31 // pred_fallthru
          _
        // Predicated region
        $region69: #{tpu_custom_call.1} parent=31 // pred_check
          %p626 = pneg %p364
        $region70: #{tpu_custom_call.1} parent=31 // pred_check_branch
          %628 = sbr.rel (%p626) target = $region72
        $region71: #{tpu_custom_call.1} parent=31 // pred_region
          %p629 = scmp.lt.s32.totalorder %s26, 1
          %s630 = scalar_select %p629, %s26, 1
          %s631 = scalar_lea.vmem %s13, %s630
        $region72: #{tpu_custom_call.1} parent=31 // pred_fallthru
          _
        // Predicated region
        $region73: #{tpu_custom_call.1} parent=31 // pred_check
          %p632 = pneg %p390
        $region74: #{tpu_custom_call.1} parent=31 // pred_check_branch
          %634 = sbr.rel (%p632) target = $region76
        $region75: #{tpu_custom_call.1} parent=31 // pred_region
          %p635 = scmp.lt.s32.totalorder %s26, 1
          %s636 = scalar_select %p635, %s26, 1
          %s637 = scalar_lea.vmem %s14, %s636
        $region76: #{tpu_custom_call.1} parent=31 // pred_fallthru
          _
        // Predicated region
        $region77: #{tpu_custom_call.1} parent=31 // pred_check
          %p638 = pneg %p416
        $region78: #{tpu_custom_call.1} parent=31 // pred_check_branch
          %640 = sbr.rel (%p638) target = $region80
        $region79: #{tpu_custom_call.1} parent=31 // pred_region
          %p641 = scmp.lt.s32.totalorder %s26, 1
          %s642 = scalar_select %p641, %s26, 1
          %s643 = scalar_lea.vmem %s15, %s642
        $region80: #{tpu_custom_call.1} parent=31 // pred_fallthru
          _
      $region32: #{tpu_custom_call.1} parent=5 // pred_fallthru
        _
      %p644 = scmp.le.s32.totalorder 1, %s26
      %p645 = scmp.lt.s32.totalorder %s26, 3
      %p646 = pnand %p644, %p645
      %p647 = pneg %p646
      // Predicated region
      $region81: #{tpu_custom_call.1} parent=5 // pred_check
        _
      $region82: #{tpu_custom_call.1} parent=5 // pred_check_branch
        %649 = sbr.rel (%p646) target = $region84
      $region83: #{tpu_custom_call.1} parent=5 // pred_region
        %s650 = ssub.s32 %s26, 1
        // Predicated region
        $region85: #{tpu_custom_call.1} parent=83 // pred_check
          %p651 = pneg %p47
        $region86: #{tpu_custom_call.1} parent=83 // pred_check_branch
          %653 = sbr.rel (%p651) target = $region88
        $region87: #{tpu_custom_call.1} parent=83 // pred_region
          %654 = dma.done [#allocation4], 512
        $region88: #{tpu_custom_call.1} parent=83 // pred_fallthru
          _
        // Predicated region
        $region89: #{tpu_custom_call.1} parent=83 // pred_check
          %p655 = pneg %p68
        $region90: #{tpu_custom_call.1} parent=83 // pred_check_branch
          %657 = sbr.rel (%p655) target = $region92
        $region91: #{tpu_custom_call.1} parent=83 // pred_region
          %658 = dma.done [#allocation7], 512
        $region92: #{tpu_custom_call.1} parent=83 // pred_fallthru
          _
        // Predicated region
        $region93: #{tpu_custom_call.1} parent=83 // pred_check
          %p659 = pneg %p89
        $region94: #{tpu_custom_call.1} parent=83 // pred_check_branch
          %661 = sbr.rel (%p659) target = $region96
        $region95: #{tpu_custom_call.1} parent=83 // pred_region
          %662 = dma.done [#allocation7], 16
        $region96: #{tpu_custom_call.1} parent=83 // pred_fallthru
          _
        // Predicated region
        $region97: #{tpu_custom_call.1} parent=83 // pred_check
          %p663 = pneg %p110
        $region98: #{tpu_custom_call.1} parent=83 // pred_check_branch
          %665 = sbr.rel (%p663) target = $region100
        $region99: #{tpu_custom_call.1} parent=83 // pred_region
          %666 = dma.done [#allocation10], 16
        $region100: #{tpu_custom_call.1} parent=83 // pred_fallthru
          _
        %s667 = sand.u32 %s31, 1
        %s668 = scalar_lea.sflag [#allocation4], %s667
        %s669 = sand.u32 %s123, 1
        %s670 = smul.addr %s669, 192
        %s671 = scalar_lea.vmem [#allocation11], %s670
        // Predicated region
        $region101: #{tpu_custom_call.1} parent=83 // pred_check
          %p672 = pneg %p136
        $region102: #{tpu_custom_call.1} parent=83 // pred_check_branch
          %674 = sbr.rel (%p672) target = $region104
        $region103: #{tpu_custom_call.1} parent=83 // pred_region
          %675 = dma.done %s668, 3072
        $region104: #{tpu_custom_call.1} parent=83 // pred_fallthru
          _
        %s676 = sand.u32 %s31, 1
        %s677 = scalar_lea.sflag [#allocation4], %s676
        %s678 = sand.u32 %s175, 1
        %s679 = smul.addr %s678, 64
        %s680 = scalar_lea.vmem [#allocation12], %s679
        // Predicated region
        $region105: #{tpu_custom_call.1} parent=83 // pred_check
          %p681 = pneg %p188
        $region106: #{tpu_custom_call.1} parent=83 // pred_check_branch
          %683 = sbr.rel (%p681) target = $region108
        $region107: #{tpu_custom_call.1} parent=83 // pred_region
          %684 = dma.done %s677, 1024
        $region108: #{tpu_custom_call.1} parent=83 // pred_fallthru
          _
        %s685 = sand.u32 %s31, 1
        %s686 = scalar_lea.sflag [#allocation4], %s685
        %s687 = sand.u32 %s279, 1
        %s688 = smul.addr %s687, 128
        %s689 = scalar_lea.vmem [#allocation13], %s688
        // Predicated region
        $region109: #{tpu_custom_call.1} parent=83 // pred_check
          %p690 = pneg %p292
        $region110: #{tpu_custom_call.1} parent=83 // pred_check_branch
          %692 = sbr.rel (%p690) target = $region112
        $region111: #{tpu_custom_call.1} parent=83 // pred_region
          %693 = dma.done %s686, 2048
        $region112: #{tpu_custom_call.1} parent=83 // pred_fallthru
          _
        %s694 = sand.u32 %s31, 1
        %s695 = scalar_lea.sflag [#allocation4], %s694
        %s696 = sand.u32 %s331, 1
        %s697 = smul.addr %s696, 128
        %s698 = scalar_lea.vmem [#allocation14], %s697
        // Predicated region
        $region113: #{tpu_custom_call.1} parent=83 // pred_check
          %p699 = pneg %p344
        $region114: #{tpu_custom_call.1} parent=83 // pred_check_branch
          %701 = sbr.rel (%p699) target = $region116
        $region115: #{tpu_custom_call.1} parent=83 // pred_region
          %702 = dma.done %s695, 2048
        $region116: #{tpu_custom_call.1} parent=83 // pred_fallthru
          _
        %p703 = pneg %p47
        %p704 = pneg %p44
        %p705 = pneg %p68
        %p706 = pneg %p65
        %p707 = pneg %p89
        %p708 = pneg %p86
        %p709 = pneg %p110
        %p710 = pneg %p107
        %s711 = sand.u32 %s31, 1
        %s712 = scalar_lea.sflag [#allocation4], %s711
        %s713 = sand.u32 %s123, 1
        %s714 = smul.addr %s713, 192
        %s715 = scalar_lea.vmem [#allocation11], %s714
        %p716 = pneg %p136
        %p717 = pneg %p133
        %p718 = scmp.lt.s32.totalorder %s31, 1
        %s719 = scalar_select %p718, %s31, 1
        %s720 = smul.addr %s719, 3
        %s721 = scalar_lea.vmem %s5, %s720
        %p722 = pneg %p162
        %p723 = pneg %p159
        %s724 = sand.u32 %s31, 1
        %s725 = scalar_lea.sflag [#allocation4], %s724
        %s726 = sand.u32 %s175, 1
        %s727 = smul.addr %s726, 64
        %s728 = scalar_lea.vmem [#allocation12], %s727
        %p729 = pneg %p188
        %p730 = pneg %p185
        %p731 = scmp.lt.s32.totalorder %s31, 1
        %s732 = scalar_select %p731, %s31, 1
        %s733 = scalar_lea.vmem %s7, %s732
        %p734 = pneg %p214
        %p735 = pneg %p211
        %p736 = scmp.lt.s32.totalorder %s31, 1
        %s737 = scalar_select %p736, %s31, 1
        %s738 = scalar_lea.vmem %s8, %s737
        %p739 = pneg %p240
        %p740 = pneg %p237
        %p741 = scmp.lt.s32.totalorder %s31, 1
        %s742 = scalar_select %p741, %s31, 1
        %s743 = scalar_lea.vmem %s9, %s742
        %p744 = pneg %p266
        %p745 = pneg %p263
        %s746 = sand.u32 %s31, 1
        %s747 = scalar_lea.sflag [#allocation4], %s746
        %s748 = sand.u32 %s279, 1
        %s749 = smul.addr %s748, 128
        %s750 = scalar_lea.vmem [#allocation13], %s749
        %p751 = pneg %p292
        %p752 = pneg %p289
        %p753 = scmp.lt.s32.totalorder %s31, 1
        %s754 = scalar_select %p753, %s31, 1
        %s755 = smul.addr %s754, 2
        %s756 = scalar_lea.vmem %s11, %s755
        %p757 = pneg %p318
        %p758 = pneg %p315
        %s759 = sand.u32 %s31, 1
        %s760 = scalar_lea.sflag [#allocation4], %s759
        %s761 = sand.u32 %s331, 1
        %s762 = smul.addr %s761, 128
        %s763 = scalar_lea.vmem [#allocation14], %s762
        %p764 = pneg %p344
        %p765 = pneg %p341
        %p766 = scmp.lt.s32.totalorder %s31, 1
        %s767 = scalar_select %p766, %s31, 1
        %s768 = scalar_lea.vmem %s13, %s767
        %p769 = pneg %p370
        %p770 = pneg %p367
        %p771 = scmp.lt.s32.totalorder %s31, 1
        %s772 = scalar_select %p771, %s31, 1
        %s773 = scalar_lea.vmem %s14, %s772
        %p774 = pneg %p396
        %p775 = pneg %p393
        %p776 = scmp.lt.s32.totalorder %s31, 1
        %s777 = scalar_select %p776, %s31, 1
        %s778 = scalar_lea.vmem %s15, %s777
        %p779 = pneg %p422
        %p780 = pneg %p419
        %p781 = pneg %p443
        %p782 = pneg %p440
        %p783 = scmp.lt.s32.totalorder %s31, 1
        %s784 = scalar_select %p783, %s31, 1
        %s785 = smul.addr %s784, 3
        %s786 = scalar_lea.vmem %s5, %s785
        %p787 = scmp.lt.s32.totalorder %s31, 1
        %s788 = scalar_select %p787, %s31, 1
        %s789 = scalar_lea.vmem %s7, %s788
        %p790 = scmp.lt.s32.totalorder %s31, 1
        %s791 = scalar_select %p790, %s31, 1
        %s792 = scalar_lea.vmem %s8, %s791
        %p793 = scmp.lt.s32.totalorder %s31, 1
        %s794 = scalar_select %p793, %s31, 1
        %s795 = scalar_lea.vmem %s9, %s794
        %p796 = scmp.lt.s32.totalorder %s31, 1
        %s797 = scalar_select %p796, %s31, 1
        %s798 = smul.addr %s797, 2
        %s799 = scalar_lea.vmem %s11, %s798
        %p800 = scmp.lt.s32.totalorder %s31, 1
        %s801 = scalar_select %p800, %s31, 1
        %s802 = scalar_lea.vmem %s13, %s801
        %p803 = scmp.lt.s32.totalorder %s31, 1
        %s804 = scalar_select %p803, %s31, 1
        %s805 = scalar_lea.vmem %s14, %s804
        %p806 = scmp.lt.s32.totalorder %s31, 1
        %s807 = scalar_select %p806, %s31, 1
        %s808 = scalar_lea.vmem %s15, %s807
        %p810 = scmp.eq.s32.totalorder %s31, 0
        // Predicated region
        $region117: #{tpu_custom_call.1} parent=83 // pred_check
          %p811 = pneg %p810
        $region118: #{tpu_custom_call.1} parent=83 // pred_check_branch
          %813 = sbr.rel (%p811) target = $region120
        $region119: #{tpu_custom_call.1} parent=83 // pred_region
          %v814 = vld [vmem:[#allocation3] sm:$0xff]
          %v815 = vld [vmem:[#allocation3 + $0x8] sm:$0xff]
          %v816 = vld [vmem:[#allocation3 + $0x10] sm:$0xff]
          %v817 = vld [vmem:[#allocation3 + $0x18] sm:$0xff]
          %v818 = vld [vmem:[#allocation8] sm:$0x1]
          %v819 = vld [vmem:[#allocation9] sm:$0x1]
          %820 = vadd.xlane.f32.xlu0 %v814
          %v821 = vpop.xlane.xlu0 %820
          %822 = vadd.xlane.f32.xlu0 %v815
          %v823 = vpop.xlane.xlu0 %822
          %824 = vadd.xlane.f32.xlu0 %v816
          %v825 = vpop.xlane.xlu0 %824
          %826 = vadd.xlane.f32.xlu0 %v817
          %v827 = vpop.xlane.xlu0 %826
          %v828 = vrcp.pop 128.0
          %v829 = vmul.f32 %v821, %v828
          %v830 = vmul.f32 %v823, %v828
          %v831 = vmul.f32 %v825, %v828
          %v832 = vmul.f32 %v827, %v828
          %v833 = vsub.f32 %v814, %v829
          %v834 = vsub.f32 %v815, %v830
          %v835 = vsub.f32 %v816, %v831
          %v836 = vsub.f32 %v817, %v832
          %v837 = vmul.f32 %v833, %v833
          %v838 = vmul.f32 %v834, %v834
          %v839 = vmul.f32 %v835, %v835
          %v840 = vmul.f32 %v836, %v836
          %841 = vadd.xlane.f32.xlu0 %v837
          %v842 = vpop.xlane.xlu0 %841
          %843 = vadd.xlane.f32.xlu0 %v838
          %v844 = vpop.xlane.xlu0 %843
          %845 = vadd.xlane.f32.xlu0 %v839
          %v846 = vpop.xlane.xlu0 %845
          %847 = vadd.xlane.f32.xlu0 %v840
          %v848 = vpop.xlane.xlu0 %847
          %v849 = vmul.f32 %v842, %v828
          %v850 = vmul.f32 %v844, %v828
          %v851 = vmul.f32 %v846, %v828
          %v852 = vmul.f32 %v848, %v828
          %v853 = vadd.f32 %v849, 1e-12
          %v854 = vadd.f32 %v850, 1e-12
          %v855 = vadd.f32 %v851, 1e-12
          %v856 = vadd.f32 %v852, 1e-12
          %v857 = vrsqrt.pop %v853
          %v858 = vrsqrt.pop %v854
          %v859 = vrsqrt.pop %v855
          %v860 = vrsqrt.pop %v856
          %v861 = vmul.f32 %v833, %v857
          %v862 = vmul.f32 %v834, %v858
          %v863 = vmul.f32 %v835, %v859
          %v864 = vmul.f32 %v836, %v860
          %v866 = vlaneseq
          %v867 = vshrl.u32 %v866, 7
          %v868 = vsub.s32 0, %v867
          %v869 = vrot.slane %v818, %v868
          %v871 = vmul.f32 %v861, %v869
          %v872 = vmul.f32 %v862, %v869
          %v873 = vmul.f32 %v863, %v869
          %v874 = vmul.f32 %v864, %v869
          %v876 = vlaneseq
          %v877 = vshrl.u32 %v876, 7
          %v878 = vsub.s32 0, %v877
          %v879 = vrot.slane %v819, %v878
          %v881 = vadd.f32 %v871, %v879
          %v882 = vadd.f32 %v872, %v879
          %v883 = vadd.f32 %v873, %v879
          %v884 = vadd.f32 %v874, %v879
          %885 = vst [vmem:[#allocation2] sm:$0xff] %v881
          %886 = vst [vmem:[#allocation2 + $0x8] sm:$0xff] %v882
          %887 = vst [vmem:[#allocation2 + $0x10] sm:$0xff] %v883
          %888 = vst [vmem:[#allocation2 + $0x18] sm:$0xff] %v884
        $region120: #{tpu_custom_call.1} parent=83 // pred_fallthru
          _
        %v889 = vld [vmem:[#allocation2] sm:$0xff]
        %v890 = vld [vmem:[#allocation2 + $0x8] sm:$0xff]
        %v891 = vld [vmem:[#allocation2 + $0x10] sm:$0xff]
        %v892 = vld [vmem:[#allocation2 + $0x18] sm:$0xff]
        %v893 = vld [vmem:[%s671] sm:$0xff]
        %v894 = vld [vmem:[%s671 + $0x8] sm:$0xf]
        %v895 = vld [vmem:[%s671 + $0xc] sm:$0xff]
        %v896 = vld [vmem:[%s671 + $0x14] sm:$0xf]
        %v897 = vld [vmem:[%s671 + $0x18] sm:$0xff]
        %v898 = vld [vmem:[%s671 + $0x20] sm:$0xf]
        %v899 = vld [vmem:[%s671 + $0x24] sm:$0xff]
        %v900 = vld [vmem:[%s671 + $0x2c] sm:$0xf]
        %v901 = vld [vmem:[%s671 + $0x30] sm:$0xff]
        %v902 = vld [vmem:[%s671 + $0x38] sm:$0xf]
        %v903 = vld [vmem:[%s671 + $0x3c] sm:$0xff]
        %v904 = vld [vmem:[%s671 + $0x44] sm:$0xf]
        %v905 = vld [vmem:[%s671 + $0x48] sm:$0xff]
        %v906 = vld [vmem:[%s671 + $0x50] sm:$0xf]
        %v907 = vld [vmem:[%s671 + $0x54] sm:$0xff]
        %v908 = vld [vmem:[%s671 + $0x5c] sm:$0xf]
        %v909 = vld [vmem:[%s671 + $0x60] sm:$0xff]
        %v910 = vld [vmem:[%s671 + $0x68] sm:$0xf]
        %v911 = vld [vmem:[%s671 + $0x6c] sm:$0xff]
        %v912 = vld [vmem:[%s671 + $0x74] sm:$0xf]
        %v913 = vld [vmem:[%s671 + $0x78] sm:$0xff]
        %v914 = vld [vmem:[%s671 + $0x80] sm:$0xf]
        %v915 = vld [vmem:[%s671 + $0x84] sm:$0xff]
        %v916 = vld [vmem:[%s671 + $0x8c] sm:$0xf]
        %v917 = vld [vmem:[%s671 + $0x90] sm:$0xff]
        %v918 = vld [vmem:[%s671 + $0x98] sm:$0xf]
        %v919 = vld [vmem:[%s671 + $0x9c] sm:$0xff]
        %v920 = vld [vmem:[%s671 + $0xa4] sm:$0xf]
        %v921 = vld [vmem:[%s671 + $0xa8] sm:$0xff]
        %v922 = vld [vmem:[%s671 + $0xb0] sm:$0xf]
        %v923 = vld [vmem:[%s671 + $0xb4] sm:$0xff]
        %v924 = vld [vmem:[%s671 + $0xbc] sm:$0xf]
        %v925 = vld [vmem:[%s786] sm:$0x7]
        %v926 = vld [vmem:[%s680] sm:$0xf]
        %v927 = vld [vmem:[%s680 + $0x4] sm:$0xf]
        %v928 = vld [vmem:[%s680 + $0x8] sm:$0xf]
        %v929 = vld [vmem:[%s680 + $0xc] sm:$0xf]
        %v930 = vld [vmem:[%s680 + $0x10] sm:$0xf]
        %v931 = vld [vmem:[%s680 + $0x14] sm:$0xf]
        %v932 = vld [vmem:[%s680 + $0x18] sm:$0xf]
        %v933 = vld [vmem:[%s680 + $0x1c] sm:$0xf]
        %v934 = vld [vmem:[%s680 + $0x20] sm:$0xf]
        %v935 = vld [vmem:[%s680 + $0x24] sm:$0xf]
        %v936 = vld [vmem:[%s680 + $0x28] sm:$0xf]
        %v937 = vld [vmem:[%s680 + $0x2c] sm:$0xf]
        %v938 = vld [vmem:[%s680 + $0x30] sm:$0xf]
        %v939 = vld [vmem:[%s680 + $0x34] sm:$0xf]
        %v940 = vld [vmem:[%s680 + $0x38] sm:$0xf]
        %v941 = vld [vmem:[%s680 + $0x3c] sm:$0xf]
        %v942 = vld [vmem:[#allocation6] sm:$0xff]
        %v943 = vld [vmem:[#allocation6 + $0x8] sm:$0xff]
        %v944 = vld [vmem:[#allocation6 + $0x10] sm:$0xff]
        %v945 = vld [vmem:[#allocation6 + $0x18] sm:$0xff]
        %v946 = vpack.c.bf16 %v890, %v889
        %v947 = vpack.c.bf16 %v892, %v891
        %v949 = vlaneseq
        %v950 = vshrl.u32 %v949, 7
        %v951 = vsub.s32 0, %v950
        %v952 = vrot.slane %v925, %v951
        %v953 = vlaneseq
        %v954 = vshrl.u32 %v953, 7
        %v955 = vsub.s32 1, %v954
        %v956 = vrot.slane %v925, %v955
        %v957 = vlaneseq
        %v958 = vshrl.u32 %v957, 7
        %v959 = vsub.s32 2, %v958
        %v960 = vrot.slane %v925, %v959
        %v996 = vunpack.c.l.b16 %v893
        %v997 = vunpack.c.h.b16 %v893
        %v998 = vunpack.c.l.b16 %v894
        %v999 = vunpack.c.l.b16 %v895
        %v1000 = vunpack.c.h.b16 %v895
        %v1001 = vunpack.c.l.b16 %v896
        %v1002 = vunpack.c.l.b16 %v897
        %v1003 = vunpack.c.h.b16 %v897
        %v1004 = vunpack.c.l.b16 %v898
        %v1005 = vunpack.c.l.b16 %v899
        %v1006 = vunpack.c.h.b16 %v899
        %v1007 = vunpack.c.l.b16 %v900
        %v1008 = vunpack.c.l.b16 %v901
        %v1009 = vunpack.c.h.b16 %v901
        %v1010 = vunpack.c.l.b16 %v902
        %v1011 = vunpack.c.l.b16 %v903
        %v1012 = vunpack.c.h.b16 %v903
        %v1013 = vunpack.c.l.b16 %v904
        %v1014 = vunpack.c.l.b16 %v905
        %v1015 = vunpack.c.h.b16 %v905
        %v1016 = vunpack.c.l.b16 %v906
        %v1017 = vunpack.c.l.b16 %v907
        %v1018 = vunpack.c.h.b16 %v907
        %v1019 = vunpack.c.l.b16 %v908
        %v1020 = vunpack.c.l.b16 %v909
        %v1021 = vunpack.c.h.b16 %v909
        %v1022 = vunpack.c.l.b16 %v910
        %v1023 = vunpack.c.l.b16 %v911
        %v1024 = vunpack.c.h.b16 %v911
        %v1025 = vunpack.c.l.b16 %v912
        %v1026 = vunpack.c.l.b16 %v913
        %v1027 = vunpack.c.h.b16 %v913
        %v1028 = vunpack.c.l.b16 %v914
        %v1029 = vunpack.c.l.b16 %v915
        %v1030 = vunpack.c.h.b16 %v915
        %v1031 = vunpack.c.l.b16 %v916
        %v1032 = vunpack.c.l.b16 %v917
        %v1033 = vunpack.c.h.b16 %v917
        %v1034 = vunpack.c.l.b16 %v918
        %v1035 = vunpack.c.l.b16 %v919
        %v1036 = vunpack.c.h.b16 %v919
        %v1037 = vunpack.c.l.b16 %v920
        %v1038 = vunpack.c.l.b16 %v921
        %v1039 = vunpack.c.h.b16 %v921
        %v1040 = vunpack.c.l.b16 %v922
        %v1041 = vunpack.c.l.b16 %v923
        %v1042 = vunpack.c.h.b16 %v923
        %v1043 = vunpack.c.l.b16 %v924
        %v1044 = vpack.c.b16 %v999, %v996
        %v1045 = vpack.c.b16 %v1000, %v997
        %v1046 = vpack.c.b16 %v1001, %v998
        %v1047 = vpack.c.b16 %v1005, %v1002
        %v1048 = vpack.c.b16 %v1006, %v1003
        %v1049 = vpack.c.b16 %v1007, %v1004
        %v1050 = vpack.c.b16 %v1011, %v1008
        %v1051 = vpack.c.b16 %v1012, %v1009
        %v1052 = vpack.c.b16 %v1013, %v1010
        %v1053 = vpack.c.b16 %v1017, %v1014
        %v1054 = vpack.c.b16 %v1018, %v1015
        %v1055 = vpack.c.b16 %v1019, %v1016
        %v1056 = vpack.c.b16 %v1023, %v1020
        %v1057 = vpack.c.b16 %v1024, %v1021
        %v1058 = vpack.c.b16 %v1025, %v1022
        %v1059 = vpack.c.b16 %v1029, %v1026
        %v1060 = vpack.c.b16 %v1030, %v1027
        %v1061 = vpack.c.b16 %v1031, %v1028
        %v1062 = vpack.c.b16 %v1035, %v1032
        %v1063 = vpack.c.b16 %v1036, %v1033
        %v1064 = vpack.c.b16 %v1037, %v1034
        %v1065 = vpack.c.b16 %v1041, %v1038
        %v1066 = vpack.c.b16 %v1042, %v1039
        %v1067 = vpack.c.b16 %v1043, %v1040
        %1092 = vmatprep.subr.bf16.mxu0 %v1045
        %1093 = vmatpush1.bf16.msra.mxu0 %v1044
        %1094 = vmatprep.subr.bf16.mxu0 %v1048
        %1095 = vmatpush1.bf16.msra.mxu0 %v1047
        %1096 = vmatprep.subr.bf16.mxu0 %v1051
        %1097 = vmatpush1.bf16.msra.mxu0 %v1050
        %1098 = vmatprep.subr.bf16.mxu0 %v1054
        %1099 = vmatpush1.bf16.msra.mxu0 %v1053
        %1100 = vmatprep.subr.bf16.mxu0 %v1057
        %1101 = vmatpush1.bf16.msra.mxu0 %v1056
        %1102 = vmatprep.subr.bf16.mxu0 %v1060
        %1103 = vmatpush1.bf16.msra.mxu0 %v1059
        %1104 = vmatprep.subr.bf16.mxu0 %v1063
        %1105 = vmatpush1.bf16.msra.mxu0 %v1062
        %1106 = vmatprep.subr.bf16.mxu0 %v1066
        %1107 = vmatpush1.bf16.msra.mxu0 %v1065
        %1108 = vmatprep.subr.bf16.mxu0 0
        %1109 = vmatpush1.bf16.msra.mxu0 0
        %1110 = vmatprep.subr.bf16.mxu0 0
        %1111 = vmatpush1.bf16.msra.mxu0 0
        %1112 = vmatprep.subr.bf16.mxu0 0
        %1113 = vmatpush1.bf16.msra.mxu0 0
        %1114 = vmatprep.subr.bf16.mxu0 0
        %1115 = vmatpush1.bf16.msra.mxu0 0
        %1116 = vmatprep.subr.bf16.mxu0 0
        %1117 = vmatpush1.bf16.msra.mxu0 0
        %1118 = vmatprep.subr.bf16.mxu0 0
        %1119 = vmatpush1.bf16.msra.mxu0 0
        %1120 = vmatprep.subr.bf16.mxu0 0
        %1121 = vmatpush1.bf16.msra.mxu0 0
        %1122 = vmatprep.subr.bf16.mxu0 0
        %1123 = vmatpush1.bf16.msra.mxu0 0
        %1124 = vmatprep.mubr.bf16.mxu0 0
        %1125 = vmatmul.mubr.bf16.gmra.mrb[0].mxu0 %v946
        %v1126 = vpop.f32.mrb[0].mxu0
        %v1127 = vadd.f32 %v952, %v1126
        %v1128 = vpop.f32.mrb[0].mxu0
        %v1129 = vadd.f32 %v956, %v1128
        %v1130 = vpop.f32.mrb[0].mxu0
        %v1131 = vadd.f32 %v952, %v1130
        %v1132 = vpop.f32.mrb[0].mxu0
        %v1133 = vadd.f32 %v956, %v1132
        %1134 = vmatprep.mubr.bf16.mxu0 0
        %1135 = vmatmul.mubr.bf16.gmra.mrb[0].mxu0 %v947
        %v1136 = vpop.f32.mrb[0].mxu0
        %v1137 = vadd.f32 %v952, %v1136
        %v1138 = vpop.f32.mrb[0].mxu0
        %v1139 = vadd.f32 %v956, %v1138
        %v1140 = vpop.f32.mrb[0].mxu0
        %v1141 = vadd.f32 %v952, %v1140
        %v1142 = vpop.f32.mrb[0].mxu0
        %v1143 = vadd.f32 %v956, %v1142
        %1144 = vdwg.mxu0
        %1145 = vmatprep.subr.bf16.mxu0 0
        %1146 = vmatpush1.bf16.msra.mxu0 %v1046
        %1147 = vmatprep.subr.bf16.mxu0 0
        %1148 = vmatpush1.bf16.msra.mxu0 %v1049
        %1149 = vmatprep.subr.bf16.mxu0 0
        %1150 = vmatpush1.bf16.msra.mxu0 %v1052
        %1151 = vmatprep.subr.bf16.mxu0 0
        %1152 = vmatpush1.bf16.msra.mxu0 %v1055
        %1153 = vmatprep.subr.bf16.mxu0 0
        %1154 = vmatpush1.bf16.msra.mxu0 %v1058
        %1155 = vmatprep.subr.bf16.mxu0 0
        %1156 = vmatpush1.bf16.msra.mxu0 %v1061
        %1157 = vmatprep.subr.bf16.mxu0 0
        %1158 = vmatpush1.bf16.msra.mxu0 %v1064
        %1159 = vmatprep.subr.bf16.mxu0 0
        %1160 = vmatpush1.bf16.msra.mxu0 %v1067
        %1161 = vmatprep.subr.bf16.mxu0 0
        %1162 = vmatpush1.bf16.msra.mxu0 0
        %1163 = vmatprep.subr.bf16.mxu0 0
        %1164 = vmatpush1.bf16.msra.mxu0 0
        %1165 = vmatprep.subr.bf16.mxu0 0
        %1166 = vmatpush1.bf16.msra.mxu0 0
        %1167 = vmatprep.subr.bf16.mxu0 0
        %1168 = vmatpush1.bf16.msra.mxu0 0
        %1169 = vmatprep.subr.bf16.mxu0 0
        %1170 = vmatpush1.bf16.msra.mxu0 0
        %1171 = vmatprep.subr.bf16.mxu0 0
        %1172 = vmatpush1.bf16.msra.mxu0 0
        %1173 = vmatprep.subr.bf16.mxu0 0
        %1174 = vmatpush1.bf16.msra.mxu0 0
        %1175 = vmatprep.subr.bf16.mxu0 0
        %1176 = vmatpush1.bf16.msra.mxu0 0
        %1177 = vmatprep.mubr.bf16.mxu0 0
        %1178 = vmatmul.mubr.bf16.gmra.mrb[0].mxu0 %v946
        %v1179 = vpop.f32.mrb[0].mxu0
        %v1180 = vadd.f32 %v960, %v1179
        %v1181 = vpop.f32.mrb[0].mxu0
        %v1182 = vpop.f32.mrb[0].mxu0
        %v1183 = vadd.f32 %v960, %v1182
        %v1184 = vpop.f32.mrb[0].mxu0
        %1185 = vmatprep.mubr.bf16.mxu0 0
        %1186 = vmatmul.mubr.bf16.gmra.mrb[0].mxu0 %v947
        %v1187 = vpop.f32.mrb[0].mxu0
        %v1188 = vadd.f32 %v960, %v1187
        %v1189 = vpop.f32.mrb[0].mxu0
        %v1190 = vpop.f32.mrb[0].mxu0
        %v1191 = vadd.f32 %v960, %v1190
        %v1192 = vpop.f32.mrb[0].mxu0
        %1193 = vdwg.mxu0
        %v1194 = vpack.c.bf16 %v1131, %v1127
        %v1195 = vpack.c.bf16 %v1141, %v1137
        %v1196 = vpack.c.bf16 %v1133, %v1129
        %v1197 = vpack.c.bf16 %v1143, %v1139
        %vm1198 = vcmask 523264
        %v1200 = vsel %vm1198, %v1194, 0
        %v1203 = vsel %vm1198, %v1195, 0
        %v1206 = vsel %vm1198, %v1196, 0
        %v1209 = vsel %vm1198, %v1197, 0
        %1211 = vmatprep.subr.bf16.mxu0 0
        %1212 = vmatpush1.bf16.xpose.msra.mxu0 %v1206
        %1213 = vmatprep.subr.bf16.mxu0 0
        %1214 = vmatpush1.bf16.xpose.msra.mxu0 %v1209
        %1215 = vmatprep.subr.bf16.mxu0 0
        %1216 = vmatpush1.bf16.xpose.msra.mxu0 0
        %1217 = vmatprep.subr.bf16.mxu0 0
        %1218 = vmatpush1.bf16.xpose.msra.mxu0 0
        %1219 = vmatprep.subr.bf16.mxu0 0
        %1220 = vmatpush1.bf16.xpose.msra.mxu0 0
        %1221 = vmatprep.subr.bf16.mxu0 0
        %1222 = vmatpush1.bf16.xpose.msra.mxu0 0
        %1223 = vmatprep.subr.bf16.mxu0 0
        %1224 = vmatpush1.bf16.xpose.msra.mxu0 0
        %1225 = vmatprep.subr.bf16.mxu0 0
        %1226 = vmatpush1.bf16.xpose.msra.mxu0 0
        %1227 = vmatprep.subr.bf16.mxu0 0
        %1228 = vmatpush1.bf16.xpose.msra.mxu0 0
        %1229 = vmatprep.subr.bf16.mxu0 0
        %1230 = vmatpush1.bf16.xpose.msra.mxu0 0
        %1231 = vmatprep.subr.bf16.mxu0 0
        %1232 = vmatpush1.bf16.xpose.msra.mxu0 0
        %1233 = vmatprep.subr.bf16.mxu0 0
        %1234 = vmatpush1.bf16.xpose.msra.mxu0 0
        %1235 = vmatprep.subr.bf16.mxu0 0
        %1236 = vmatpush1.bf16.xpose.msra.mxu0 0
        %1237 = vmatprep.subr.bf16.mxu0 0
        %1238 = vmatpush1.bf16.xpose.msra.mxu0 0
        %1239 = vmatprep.subr.bf16.mxu0 0
        %1240 = vmatpush1.bf16.xpose.msra.mxu0 0
        %1241 = vmatprep.subr.bf16.mxu0 0
        %1242 = vmatpush1.bf16.xpose.msra.mxu0 0
        %1243 = vmatprep.mubr.bf16.mxu0 0
        %1244 = vmatmul.mubr.bf16.gmra.mrb[0].mxu0 %v1200
        %v1245 = vpop.f32.mrb[0].mxu0
        %v1246 = vadd.f32 0.0, %v1245
        %v1247 = vpop.f32.mrb[0].mxu0
        %v1248 = vpop.f32.mrb[0].mxu0
        %v1249 = vadd.f32 0.0, %v1248
        %v1250 = vpop.f32.mrb[0].mxu0
        %1251 = vmatprep.mubr.bf16.mxu0 0
        %1252 = vmatmul.mubr.bf16.gmra.mrb[0].mxu0 %v1203
        %v1253 = vpop.f32.mrb[0].mxu0
        %v1254 = vadd.f32 0.0, %v1253
        %v1255 = vpop.f32.mrb[0].mxu0
        %v1256 = vpop.f32.mrb[0].mxu0
        %v1257 = vadd.f32 0.0, %v1256
        %v1258 = vpop.f32.mrb[0].mxu0
        %1259 = vdwg.mxu0
        %v1260 = vmul.f32 %v1246, 0.125
        %v1261 = vmul.f32 %v1249, 0.125
        %v1262 = vmul.f32 %v1254, 0.125
        %v1263 = vmul.f32 %v1257, 0.125
        %v1264 = vadd.f32 %v1260, %v942
        %v1265 = vadd.f32 %v1261, %v943
        %v1266 = vadd.f32 %v1262, %v944
        %v1267 = vadd.f32 %v1263, %v945
        %vm1268 = vcmask 261120
        %v1269 = vsel %vm1268, %v1264, -inf
        %1270 = vmax.xlane.f32.xlu0 %v1269
        %v1271 = vpop.xlane.xlu0 %1270
        %v1272 = vsel %vm1268, %v1265, -inf
        %1273 = vmax.xlane.f32.xlu0 %v1272
        %v1274 = vpop.xlane.xlu0 %1273
        %v1275 = vsel %vm1268, %v1266, -inf
        %1276 = vmax.xlane.f32.xlu0 %v1275
        %v1277 = vpop.xlane.xlu0 %1276
        %v1278 = vsel %vm1268, %v1267, -inf
        %1279 = vmax.xlane.f32.xlu0 %v1278
        %v1280 = vpop.xlane.xlu0 %1279
        %v1281 = vsub.f32 %v1264, %v1271
        %v1282 = vsub.f32 %v1265, %v1274
        %v1283 = vsub.f32 %v1266, %v1277
        %v1284 = vsub.f32 %v1267, %v1280
        %v1285 = vmul.f32 %v1281, 1.442695
        %v1286 = vpow.pop %v1285
        %v1287 = vmul.f32 %v1282, 1.442695
        %v1288 = vpow.pop %v1287
        %v1289 = vmul.f32 %v1283, 1.442695
        %v1290 = vpow.pop %v1289
        %v1291 = vmul.f32 %v1284, 1.442695
        %v1292 = vpow.pop %v1291
        %v1293 = vsel %vm1268, %v1286, 0.0
        %1294 = vadd.xlane.f32.xlu0 %v1293
        %v1295 = vpop.xlane.xlu0 %1294
        %v1296 = vsel %vm1268, %v1288, 0.0
        %1297 = vadd.xlane.f32.xlu0 %v1296
        %v1298 = vpop.xlane.xlu0 %1297
        %v1299 = vsel %vm1268, %v1290, 0.0
        %1300 = vadd.xlane.f32.xlu0 %v1299
        %v1301 = vpop.xlane.xlu0 %1300
        %v1302 = vsel %vm1268, %v1292, 0.0
        %1303 = vadd.xlane.f32.xlu0 %v1302
        %v1304 = vpop.xlane.xlu0 %1303
        %v1305 = vrcp.pop %v1295
        %v1306 = vmul.f32 %v1286, %v1305
        %v1307 = vrcp.pop %v1298
        %v1308 = vmul.f32 %v1288, %v1307
        %v1309 = vrcp.pop %v1301
        %v1310 = vmul.f32 %v1290, %v1309
        %v1311 = vrcp.pop %v1304
        %v1312 = vmul.f32 %v1292, %v1311
        %v1313 = vpack.c.bf16 %v1308, %v1306
        %v1314 = vpack.c.bf16 %v1312, %v1310
        %v1315 = vpack.c.bf16 %v1183, %v1180
        %v1316 = vpack.c.bf16 %v1191, %v1188
        %v1318 = vsel %vm1268, %v1313, 0
        %v1321 = vsel %vm1268, %v1314, 0
        %1323 = vmatprep.subr.bf16.mxu0 0
        %1324 = vmatpush1.bf16.msra.mxu0 %v1315
        %1325 = vmatprep.subr.bf16.mxu0 0
        %1326 = vmatpush1.bf16.msra.mxu0 %v1316
        %1327 = vmatprep.subr.bf16.mxu0 0
        %1328 = vmatpush1.bf16.msra.mxu0 0
        %1329 = vmatprep.subr.bf16.mxu0 0
        %1330 = vmatpush1.bf16.msra.mxu0 0
        %1331 = vmatprep.subr.bf16.mxu0 0
        %1332 = vmatpush1.bf16.msra.mxu0 0
        %1333 = vmatprep.subr.bf16.mxu0 0
        %1334 = vmatpush1.bf16.msra.mxu0 0
        %1335 = vmatprep.subr.bf16.mxu0 0
        %1336 = vmatpush1.bf16.msra.mxu0 0
        %1337 = vmatprep.subr.bf16.mxu0 0
        %1338 = vmatpush1.bf16.msra.mxu0 0
        %1339 = vmatprep.subr.bf16.mxu0 0
        %1340 = vmatpush1.bf16.msra.mxu0 0
        %1341 = vmatprep.subr.bf16.mxu0 0
        %1342 = vmatpush1.bf16.msra.mxu0 0
        %1343 = vmatprep.subr.bf16.mxu0 0
        %1344 = vmatpush1.bf16.msra.mxu0 0
        %1345 = vmatprep.subr.bf16.mxu0 0
        %1346 = vmatpush1.bf16.msra.mxu0 0
        %1347 = vmatprep.subr.bf16.mxu0 0
        %1348 = vmatpush1.bf16.msra.mxu0 0
        %1349 = vmatprep.subr.bf16.mxu0 0
        %1350 = vmatpush1.bf16.msra.mxu0 0
        %1351 = vmatprep.subr.bf16.mxu0 0
        %1352 = vmatpush1.bf16.msra.mxu0 0
        %1353 = vmatprep.subr.bf16.mxu0 0
        %1354 = vmatpush1.bf16.msra.mxu0 0
        %1355 = vmatprep.mubr.bf16.mxu0 0
        %1356 = vmatmul.mubr.bf16.gmra.mrb[0].mxu0 %v1318
        %v1357 = vpop.f32.mrb[0].mxu0
        %v1358 = vadd.f32 0.0, %v1357
        %v1359 = vpop.f32.mrb[0].mxu0
        %v1360 = vpop.f32.mrb[0].mxu0
        %v1361 = vadd.f32 0.0, %v1360
        %v1362 = vpop.f32.mrb[0].mxu0
        %1363 = vmatprep.mubr.bf16.mxu0 0
        %1364 = vmatmul.mubr.bf16.gmra.mrb[0].mxu0 %v1321
        %v1365 = vpop.f32.mrb[0].mxu0
        %v1366 = vadd.f32 0.0, %v1365
        %v1367 = vpop.f32.mrb[0].mxu0
        %v1368 = vpop.f32.mrb[0].mxu0
        %v1369 = vadd.f32 0.0, %v1368
        %v1370 = vpop.f32.mrb[0].mxu0
        %1371 = vdwg.mxu0
        %v1372 = vpack.c.bf16 %v1361, %v1358
        %v1373 = vpack.c.bf16 %v1369, %v1366
        %1376 = vrot.lane.b32.xlu0 %v1194, 64
        %v1377 = vpop.permute.xlu0 %1376
        %1378 = vrot.lane.b32.xlu0 %v1195, 64
        %v1379 = vpop.permute.xlu0 %1378
        %1382 = vrot.lane.b32.xlu0 %v1196, 64
        %v1383 = vpop.permute.xlu0 %1382
        %1384 = vrot.lane.b32.xlu0 %v1197, 64
        %v1385 = vpop.permute.xlu0 %1384
        %v1387 = vsel %vm1198, %v1377, 0
        %v1390 = vsel %vm1198, %v1379, 0
        %v1393 = vsel %vm1198, %v1383, 0
        %v1396 = vsel %vm1198, %v1385, 0
        %1398 = vmatprep.subr.bf16.mxu0 0
        %1399 = vmatpush1.bf16.xpose.msra.mxu0 %v1393
        %1400 = vmatprep.subr.bf16.mxu0 0
        %1401 = vmatpush1.bf16.xpose.msra.mxu0 %v1396
        %1402 = vmatprep.subr.bf16.mxu0 0
        %1403 = vmatpush1.bf16.xpose.msra.mxu0 0
        %1404 = vmatprep.subr.bf16.mxu0 0
        %1405 = vmatpush1.bf16.xpose.msra.mxu0 0
        %1406 = vmatprep.subr.bf16.mxu0 0
        %1407 = vmatpush1.bf16.xpose.msra.mxu0 0
        %1408 = vmatprep.subr.bf16.mxu0 0
        %1409 = vmatpush1.bf16.xpose.msra.mxu0 0
        %1410 = vmatprep.subr.bf16.mxu0 0
        %1411 = vmatpush1.bf16.xpose.msra.mxu0 0
        %1412 = vmatprep.subr.bf16.mxu0 0
        %1413 = vmatpush1.bf16.xpose.msra.mxu0 0
        %1414 = vmatprep.subr.bf16.mxu0 0
        %1415 = vmatpush1.bf16.xpose.msra.mxu0 0
        %1416 = vmatprep.subr.bf16.mxu0 0
        %1417 = vmatpush1.bf16.xpose.msra.mxu0 0
        %1418 = vmatprep.subr.bf16.mxu0 0
        %1419 = vmatpush1.bf16.xpose.msra.mxu0 0
        %1420 = vmatprep.subr.bf16.mxu0 0
        %1421 = vmatpush1.bf16.xpose.msra.mxu0 0
        %1422 = vmatprep.subr.bf16.mxu0 0
        %1423 = vmatpush1.bf16.xpose.msra.mxu0 0
        %1424 = vmatprep.subr.bf16.mxu0 0
        %1425 = vmatpush1.bf16.xpose.msra.mxu0 0
        %1426 = vmatprep.subr.bf16.mxu0 0
        %1427 = vmatpush1.bf16.xpose.msra.mxu0 0
        %1428 = vmatprep.subr.bf16.mxu0 0
        %1429 = vmatpush1.bf16.xpose.msra.mxu0 0
        %1430 = vmatprep.mubr.bf16.mxu0 0
        %1431 = vmatmul.mubr.bf16.gmra.mrb[0].mxu0 %v1387
        %v1432 = vpop.f32.mrb[0].mxu0
        %v1433 = vadd.f32 0.0, %v1432
        %v1434 = vpop.f32.mrb[0].mxu0
        %v1435 = vpop.f32.mrb[0].mxu0
        %v1436 = vadd.f32 0.0, %v1435
        %v1437 = vpop.f32.mrb[0].mxu0
        %1438 = vmatprep.mubr.bf16.mxu0 0
        %1439 = vmatmul.mubr.bf16.gmra.mrb[0].mxu0 %v1390
        %v1440 = vpop.f32.mrb[0].mxu0
        %v1441 = vadd.f32 0.0, %v1440
        %v1442 = vpop.f32.mrb[0].mxu0
        %v1443 = vpop.f32.mrb[0].mxu0
        %v1444 = vadd.f32 0.0, %v1443
        %v1445 = vpop.f32.mrb[0].mxu0
        %1446 = vdwg.mxu0
        %v1447 = vmul.f32 %v1433, 0.125
        %v1448 = vmul.f32 %v1436, 0.125
        %v1449 = vmul.f32 %v1441, 0.125
        %v1450 = vmul.f32 %v1444, 0.125
        %v1451 = vadd.f32 %v1447, %v942
        %v1452 = vadd.f32 %v1448, %v943
        %v1453 = vadd.f32 %v1449, %v944
        %v1454 = vadd.f32 %v1450, %v945
        %v1455 = vsel %vm1268, %v1451, -inf
        %1456 = vmax.xlane.f32.xlu0 %v1455
        %v1457 = vpop.xlane.xlu0 %1456
        %v1458 = vsel %vm1268, %v1452, -inf
        %1459 = vmax.xlane.f32.xlu0 %v1458
        %v1460 = vpop.xlane.xlu0 %1459
        %v1461 = vsel %vm1268, %v1453, -inf
        %1462 = vmax.xlane.f32.xlu0 %v1461
        %v1463 = vpop.xlane.xlu0 %1462
        %v1464 = vsel %vm1268, %v1454, -inf
        %1465 = vmax.xlane.f32.xlu0 %v1464
        %v1466 = vpop.xlane.xlu0 %1465
        %v1467 = vsub.f32 %v1451, %v1457
        %v1468 = vsub.f32 %v1452, %v1460
        %v1469 = vsub.f32 %v1453, %v1463
        %v1470 = vsub.f32 %v1454, %v1466
        %v1471 = vmul.f32 %v1467, 1.442695
        %v1472 = vpow.pop %v1471
        %v1473 = vmul.f32 %v1468, 1.442695
        %v1474 = vpow.pop %v1473
        %v1475 = vmul.f32 %v1469, 1.442695
        %v1476 = vpow.pop %v1475
        %v1477 = vmul.f32 %v1470, 1.442695
        %v1478 = vpow.pop %v1477
        %v1479 = vsel %vm1268, %v1472, 0.0
        %1480 = vadd.xlane.f32.xlu0 %v1479
        %v1481 = vpop.xlane.xlu0 %1480
        %v1482 = vsel %vm1268, %v1474, 0.0
        %1483 = vadd.xlane.f32.xlu0 %v1482
        %v1484 = vpop.xlane.xlu0 %1483
        %v1485 = vsel %vm1268, %v1476, 0.0
        %1486 = vadd.xlane.f32.xlu0 %v1485
        %v1487 = vpop.xlane.xlu0 %1486
        %v1488 = vsel %vm1268, %v1478, 0.0
        %1489 = vadd.xlane.f32.xlu0 %v1488
        %v1490 = vpop.xlane.xlu0 %1489
        %v1491 = vrcp.pop %v1481
        %v1492 = vmul.f32 %v1472, %v1491
        %v1493 = vrcp.pop %v1484
        %v1494 = vmul.f32 %v1474, %v1493
        %v1495 = vrcp.pop %v1487
        %v1496 = vmul.f32 %v1476, %v1495
        %v1497 = vrcp.pop %v1490
        %v1498 = vmul.f32 %v1478, %v1497
        %v1499 = vpack.c.bf16 %v1494, %v1492
        %v1500 = vpack.c.bf16 %v1498, %v1496
        %1503 = vrot.lane.b32.xlu0 %v1315, 64
        %v1504 = vpop.permute.xlu0 %1503
        %1505 = vrot.lane.b32.xlu0 %v1316, 64
        %v1506 = vpop.permute.xlu0 %1505
        %v1510 = vsel %vm1268, %v1499, 0
        %v1513 = vsel %vm1268, %v1500, 0
        %1515 = vmatprep.subr.bf16.mxu0 0
        %1516 = vmatpush1.bf16.msra.mxu0 %v1504
        %1517 = vmatprep.subr.bf16.mxu0 0
        %1518 = vmatpush1.bf16.msra.mxu0 %v1506
        %1519 = vmatprep.subr.bf16.mxu0 0
        %1520 = vmatpush1.bf16.msra.mxu0 0
        %1521 = vmatprep.subr.bf16.mxu0 0
        %1522 = vmatpush1.bf16.msra.mxu0 0
        %1523 = vmatprep.subr.bf16.mxu0 0
        %1524 = vmatpush1.bf16.msra.mxu0 0
        %1525 = vmatprep.subr.bf16.mxu0 0
        %1526 = vmatpush1.bf16.msra.mxu0 0
        %1527 = vmatprep.subr.bf16.mxu0 0
        %1528 = vmatpush1.bf16.msra.mxu0 0
        %1529 = vmatprep.subr.bf16.mxu0 0
        %1530 = vmatpush1.bf16.msra.mxu0 0
        %1531 = vmatprep.subr.bf16.mxu0 0
        %1532 = vmatpush1.bf16.msra.mxu0 0
        %1533 = vmatprep.subr.bf16.mxu0 0
        %1534 = vmatpush1.bf16.msra.mxu0 0
        %1535 = vmatprep.subr.bf16.mxu0 0
        %1536 = vmatpush1.bf16.msra.mxu0 0
        %1537 = vmatprep.subr.bf16.mxu0 0
        %1538 = vmatpush1.bf16.msra.mxu0 0
        %1539 = vmatprep.subr.bf16.mxu0 0
        %1540 = vmatpush1.bf16.msra.mxu0 0
        %1541 = vmatprep.subr.bf16.mxu0 0
        %1542 = vmatpush1.bf16.msra.mxu0 0
        %1543 = vmatprep.subr.bf16.mxu0 0
        %1544 = vmatpush1.bf16.msra.mxu0 0
        %1545 = vmatprep.subr.bf16.mxu0 0
        %1546 = vmatpush1.bf16.msra.mxu0 0
        %1547 = vmatprep.mubr.bf16.mxu0 0
        %1548 = vmatmul.mubr.bf16.gmra.mrb[0].mxu0 %v1510
        %v1549 = vpop.f32.mrb[0].mxu0
        %v1550 = vadd.f32 0.0, %v1549
        %v1551 = vpop.f32.mrb[0].mxu0
        %v1552 = vpop.f32.mrb[0].mxu0
        %v1553 = vadd.f32 0.0, %v1552
        %v1554 = vpop.f32.mrb[0].mxu0
        %1555 = vmatprep.mubr.bf16.mxu0 0
        %1556 = vmatmul.mubr.bf16.gmra.mrb[0].mxu0 %v1513
        %v1557 = vpop.f32.mrb[0].mxu0
        %v1558 = vadd.f32 0.0, %v1557
        %v1559 = vpop.f32.mrb[0].mxu0
        %v1560 = vpop.f32.mrb[0].mxu0
        %v1561 = vadd.f32 0.0, %v1560
        %v1562 = vpop.f32.mrb[0].mxu0
        %1563 = vdwg.mxu0
        %v1564 = vpack.c.bf16 %v1553, %v1550
        %v1565 = vpack.c.bf16 %v1561, %v1558
        %v1574 = vunpack.c.l.b16 %v934
        %v1575 = vunpack.c.l.b16 %v935
        %v1576 = vunpack.c.l.b16 %v936
        %v1577 = vunpack.c.l.b16 %v937
        %v1578 = vunpack.c.l.b16 %v938
        %v1579 = vunpack.c.l.b16 %v939
        %v1580 = vunpack.c.l.b16 %v940
        %v1581 = vunpack.c.l.b16 %v941
        %v1582 = vpack.c.b16 %v1575, %v1574
        %v1583 = vpack.c.b16 %v1577, %v1576
        %v1584 = vpack.c.b16 %v1579, %v1578
        %v1585 = vpack.c.b16 %v1581, %v1580
        %v1591 = vsel %vm1198, %v1564, 0
        %v1594 = vsel %vm1198, %v1565, 0
        %1596 = vmatprep.subr.bf16.mxu0 0
        %1597 = vmatpush1.bf16.msra.mxu0 %v1582
        %1598 = vmatprep.subr.bf16.mxu0 0
        %1599 = vmatpush1.bf16.msra.mxu0 %v1583
        %1600 = vmatprep.subr.bf16.mxu0 0
        %1601 = vmatpush1.bf16.msra.mxu0 %v1584
        %1602 = vmatprep.subr.bf16.mxu0 0
        %1603 = vmatpush1.bf16.msra.mxu0 %v1585
        %1604 = vmatprep.subr.bf16.mxu0 0
        %1605 = vmatpush1.bf16.msra.mxu0 0
        %1606 = vmatprep.subr.bf16.mxu0 0
        %1607 = vmatpush1.bf16.msra.mxu0 0
        %1608 = vmatprep.subr.bf16.mxu0 0
        %1609 = vmatpush1.bf16.msra.mxu0 0
        %1610 = vmatprep.subr.bf16.mxu0 0
        %1611 = vmatpush1.bf16.msra.mxu0 0
        %1612 = vmatprep.subr.bf16.mxu0 0
        %1613 = vmatpush1.bf16.msra.mxu0 0
        %1614 = vmatprep.subr.bf16.mxu0 0
        %1615 = vmatpush1.bf16.msra.mxu0 0
        %1616 = vmatprep.subr.bf16.mxu0 0
        %1617 = vmatpush1.bf16.msra.mxu0 0
        %1618 = vmatprep.subr.bf16.mxu0 0
        %1619 = vmatpush1.bf16.msra.mxu0 0
        %1620 = vmatprep.subr.bf16.mxu0 0
        %1621 = vmatpush1.bf16.msra.mxu0 0
        %1622 = vmatprep.subr.bf16.mxu0 0
        %1623 = vmatpush1.bf16.msra.mxu0 0
        %1624 = vmatprep.subr.bf16.mxu0 0
        %1625 = vmatpush1.bf16.msra.mxu0 0
        %1626 = vmatprep.subr.bf16.mxu0 0
        %1627 = vmatpush1.bf16.msra.mxu0 0
        %1628 = vmatprep.mubr.bf16.mxu0 0
        %1629 = vmatmul.mubr.bf16.gmra.mrb[0].mxu0 %v1591
        %v1630 = vpop.f32.mrb[0].mxu0
        %v1631 = vadd.f32 0.0, %v1630
        %v1632 = vpop.f32.mrb[0].mxu0
        %v1633 = vpop.f32.mrb[0].mxu0
        %v1634 = vadd.f32 0.0, %v1633
        %v1635 = vpop.f32.mrb[0].mxu0
        %1636 = vmatprep.mubr.bf16.mxu0 0
        %1637 = vmatmul.mubr.bf16.gmra.mrb[0].mxu0 %v1594
        %v1638 = vpop.f32.mrb[0].mxu0
        %v1639 = vadd.f32 0.0, %v1638
        %v1640 = vpop.f32.mrb[0].mxu0
        %v1641 = vpop.f32.mrb[0].mxu0
        %v1642 = vadd.f32 0.0, %v1641
        %v1643 = vpop.f32.mrb[0].mxu0
        %1644 = vdwg.mxu0
        %v1653 = vunpack.c.l.b16 %v926
        %v1654 = vunpack.c.l.b16 %v927
        %v1655 = vunpack.c.l.b16 %v928
        %v1656 = vunpack.c.l.b16 %v929
        %v1657 = vunpack.c.l.b16 %v930
        %v1658 = vunpack.c.l.b16 %v931
        %v1659 = vunpack.c.l.b16 %v932
        %v1660 = vunpack.c.l.b16 %v933
        %v1661 = vpack.c.b16 %v1654, %v1653
        %v1662 = vpack.c.b16 %v1656, %v1655
        %v1663 = vpack.c.b16 %v1658, %v1657
        %v1664 = vpack.c.b16 %v1660, %v1659
        %v1670 = vsel %vm1198, %v1372, 0
        %v1673 = vsel %vm1198, %v1373, 0
        %1675 = vmatprep.subr.bf16.mxu0 0
        %1676 = vmatpush1.bf16.msra.mxu0 %v1661
        %1677 = vmatprep.subr.bf16.mxu0 0
        %1678 = vmatpush1.bf16.msra.mxu0 %v1662
        %1679 = vmatprep.subr.bf16.mxu0 0
        %1680 = vmatpush1.bf16.msra.mxu0 %v1663
        %1681 = vmatprep.subr.bf16.mxu0 0
        %1682 = vmatpush1.bf16.msra.mxu0 %v1664
        %1683 = vmatprep.subr.bf16.mxu0 0
        %1684 = vmatpush1.bf16.msra.mxu0 0
        %1685 = vmatprep.subr.bf16.mxu0 0
        %1686 = vmatpush1.bf16.msra.mxu0 0
        %1687 = vmatprep.subr.bf16.mxu0 0
        %1688 = vmatpush1.bf16.msra.mxu0 0
        %1689 = vmatprep.subr.bf16.mxu0 0
        %1690 = vmatpush1.bf16.msra.mxu0 0
        %1691 = vmatprep.subr.bf16.mxu0 0
        %1692 = vmatpush1.bf16.msra.mxu0 0
        %1693 = vmatprep.subr.bf16.mxu0 0
        %1694 = vmatpush1.bf16.msra.mxu0 0
        %1695 = vmatprep.subr.bf16.mxu0 0
        %1696 = vmatpush1.bf16.msra.mxu0 0
        %1697 = vmatprep.subr.bf16.mxu0 0
        %1698 = vmatpush1.bf16.msra.mxu0 0
        %1699 = vmatprep.subr.bf16.mxu0 0
        %1700 = vmatpush1.bf16.msra.mxu0 0
        %1701 = vmatprep.subr.bf16.mxu0 0
        %1702 = vmatpush1.bf16.msra.mxu0 0
        %1703 = vmatprep.subr.bf16.mxu0 0
        %1704 = vmatpush1.bf16.msra.mxu0 0
        %1705 = vmatprep.subr.bf16.mxu0 0
        %1706 = vmatpush1.bf16.msra.mxu0 0
        %1707 = vmatprep.mubr.bf16.mxu0 0
        %1708 = vmatmul.mubr.bf16.gmra.mrb[0].mxu0 %v1670
        %v1709 = vpop.f32.mrb[0].mxu0
        %v1710 = vadd.f32 %v1631, %v1709
        %v1711 = vpop.f32.mrb[0].mxu0
        %v1712 = vpop.f32.mrb[0].mxu0
        %v1713 = vadd.f32 %v1634, %v1712
        %v1714 = vpop.f32.mrb[0].mxu0
        %1715 = vmatprep.mubr.bf16.mxu0 0
        %1716 = vmatmul.mubr.bf16.gmra.mrb[0].mxu0 %v1673
        %v1717 = vpop.f32.mrb[0].mxu0
        %v1718 = vadd.f32 %v1639, %v1717
        %v1719 = vpop.f32.mrb[0].mxu0
        %v1720 = vpop.f32.mrb[0].mxu0
        %v1721 = vadd.f32 %v1642, %v1720
        %v1722 = vpop.f32.mrb[0].mxu0
        %1723 = vdwg.mxu0
        %v1724 = vld [vmem:[%s789] sm:$0x1]
        %v1726 = vlaneseq
        %v1727 = vshrl.u32 %v1726, 7
        %v1728 = vsub.s32 0, %v1727
        %v1729 = vrot.slane %v1724, %v1728
        %v1731 = vadd.f32 %v1710, %v1729
        %v1732 = vadd.f32 %v1713, %v1729
        %v1733 = vadd.f32 %v1718, %v1729
        %v1734 = vadd.f32 %v1721, %v1729
        %v1735 = vadd.f32 %v889, %v1731
        %v1736 = vadd.f32 %v890, %v1732
        %v1737 = vadd.f32 %v891, %v1733
        %v1738 = vadd.f32 %v892, %v1734
        %v1739 = vld [vmem:[%s792] sm:$0x1]
        %v1740 = vld [vmem:[%s795] sm:$0x1]
        %1741 = vadd.xlane.f32.xlu0 %v1735
        %v1742 = vpop.xlane.xlu0 %1741
        %1743 = vadd.xlane.f32.xlu0 %v1736
        %v1744 = vpop.xlane.xlu0 %1743
        %1745 = vadd.xlane.f32.xlu0 %v1737
        %v1746 = vpop.xlane.xlu0 %1745
        %1747 = vadd.xlane.f32.xlu0 %v1738
        %v1748 = vpop.xlane.xlu0 %1747
        %v1749 = vrcp.pop 128.0
        %v1750 = vmul.f32 %v1742, %v1749
        %v1751 = vmul.f32 %v1744, %v1749
        %v1752 = vmul.f32 %v1746, %v1749
        %v1753 = vmul.f32 %v1748, %v1749
        %v1754 = vsub.f32 %v1735, %v1750
        %v1755 = vsub.f32 %v1736, %v1751
        %v1756 = vsub.f32 %v1737, %v1752
        %v1757 = vsub.f32 %v1738, %v1753
        %v1758 = vmul.f32 %v1754, %v1754
        %v1759 = vmul.f32 %v1755, %v1755
        %v1760 = vmul.f32 %v1756, %v1756
        %v1761 = vmul.f32 %v1757, %v1757
        %1762 = vadd.xlane.f32.xlu0 %v1758
        %v1763 = vpop.xlane.xlu0 %1762
        %1764 = vadd.xlane.f32.xlu0 %v1759
        %v1765 = vpop.xlane.xlu0 %1764
        %1766 = vadd.xlane.f32.xlu0 %v1760
        %v1767 = vpop.xlane.xlu0 %1766
        %1768 = vadd.xlane.f32.xlu0 %v1761
        %v1769 = vpop.xlane.xlu0 %1768
        %v1770 = vmul.f32 %v1763, %v1749
        %v1771 = vmul.f32 %v1765, %v1749
        %v1772 = vmul.f32 %v1767, %v1749
        %v1773 = vmul.f32 %v1769, %v1749
        %v1774 = vadd.f32 %v1770, 1e-12
        %v1775 = vadd.f32 %v1771, 1e-12
        %v1776 = vadd.f32 %v1772, 1e-12
        %v1777 = vadd.f32 %v1773, 1e-12
        %v1778 = vrsqrt.pop %v1774
        %v1779 = vrsqrt.pop %v1775
        %v1780 = vrsqrt.pop %v1776
        %v1781 = vrsqrt.pop %v1777
        %v1782 = vmul.f32 %v1754, %v1778
        %v1783 = vmul.f32 %v1755, %v1779
        %v1784 = vmul.f32 %v1756, %v1780
        %v1785 = vmul.f32 %v1757, %v1781
        %v1787 = vlaneseq
        %v1788 = vshrl.u32 %v1787, 7
        %v1789 = vsub.s32 0, %v1788
        %v1790 = vrot.slane %v1739, %v1789
        %v1792 = vmul.f32 %v1782, %v1790
        %v1793 = vmul.f32 %v1783, %v1790
        %v1794 = vmul.f32 %v1784, %v1790
        %v1795 = vmul.f32 %v1785, %v1790
        %v1797 = vlaneseq
        %v1798 = vshrl.u32 %v1797, 7
        %v1799 = vsub.s32 0, %v1798
        %v1800 = vrot.slane %v1740, %v1799
        %v1802 = vadd.f32 %v1792, %v1800
        %v1803 = vadd.f32 %v1793, %v1800
        %v1804 = vadd.f32 %v1794, %v1800
        %v1805 = vadd.f32 %v1795, %v1800
        %v1806 = vld [vmem:[%s689] sm:$0xff]
        %v1807 = vld [vmem:[%s689 + $0x8] sm:$0xff]
        %v1808 = vld [vmem:[%s689 + $0x10] sm:$0xff]
        %v1809 = vld [vmem:[%s689 + $0x18] sm:$0xff]
        %v1810 = vld [vmem:[%s689 + $0x20] sm:$0xff]
        %v1811 = vld [vmem:[%s689 + $0x28] sm:$0xff]
        %v1812 = vld [vmem:[%s689 + $0x30] sm:$0xff]
        %v1813 = vld [vmem:[%s689 + $0x38] sm:$0xff]
        %v1814 = vld [vmem:[%s689 + $0x40] sm:$0xff]
        %v1815 = vld [vmem:[%s689 + $0x48] sm:$0xff]
        %v1816 = vld [vmem:[%s689 + $0x50] sm:$0xff]
        %v1817 = vld [vmem:[%s689 + $0x58] sm:$0xff]
        %v1818 = vld [vmem:[%s689 + $0x60] sm:$0xff]
        %v1819 = vld [vmem:[%s689 + $0x68] sm:$0xff]
        %v1820 = vld [vmem:[%s689 + $0x70] sm:$0xff]
        %v1821 = vld [vmem:[%s689 + $0x78] sm:$0xff]
        %v1822 = vpack.c.bf16 %v1803, %v1802
        %v1823 = vpack.c.bf16 %v1805, %v1804
        %v1824 = vld [vmem:[%s799] sm:$0x3]
        %v1826 = vlaneseq
        %v1827 = vshrl.u32 %v1826, 7
        %v1828 = vsub.s32 0, %v1827
        %v1829 = vrot.slane %v1824, %v1828
        %v1830 = vlaneseq
        %v1831 = vshrl.u32 %v1830, 7
        %v1832 = vsub.s32 1, %v1831
        %v1833 = vrot.slane %v1824, %v1832
        %v1852 = vunpack.c.l.b16 %v1806
        %v1853 = vunpack.c.h.b16 %v1806
        %v1854 = vunpack.c.l.b16 %v1807
        %v1855 = vunpack.c.h.b16 %v1807
        %v1856 = vunpack.c.l.b16 %v1808
        %v1857 = vunpack.c.h.b16 %v1808
        %v1858 = vunpack.c.l.b16 %v1809
        %v1859 = vunpack.c.h.b16 %v1809
        %v1860 = vunpack.c.l.b16 %v1810
        %v1861 = vunpack.c.h.b16 %v1810
        %v1862 = vunpack.c.l.b16 %v1811
        %v1863 = vunpack.c.h.b16 %v1811
        %v1864 = vunpack.c.l.b16 %v1812
        %v1865 = vunpack.c.h.b16 %v1812
        %v1866 = vunpack.c.l.b16 %v1813
        %v1867 = vunpack.c.h.b16 %v1813
        %v1868 = vunpack.c.l.b16 %v1814
        %v1869 = vunpack.c.h.b16 %v1814
        %v1870 = vunpack.c.l.b16 %v1815
        %v1871 = vunpack.c.h.b16 %v1815
        %v1872 = vunpack.c.l.b16 %v1816
        %v1873 = vunpack.c.h.b16 %v1816
        %v1874 = vunpack.c.l.b16 %v1817
        %v1875 = vunpack.c.h.b16 %v1817
        %v1876 = vunpack.c.l.b16 %v1818
        %v1877 = vunpack.c.h.b16 %v1818
        %v1878 = vunpack.c.l.b16 %v1819
        %v1879 = vunpack.c.h.b16 %v1819
        %v1880 = vunpack.c.l.b16 %v1820
        %v1881 = vunpack.c.h.b16 %v1820
        %v1882 = vunpack.c.l.b16 %v1821
        %v1883 = vunpack.c.h.b16 %v1821
        %v1884 = vpack.c.b16 %v1854, %v1852
        %v1885 = vpack.c.b16 %v1855, %v1853
        %v1886 = vpack.c.b16 %v1858, %v1856
        %v1887 = vpack.c.b16 %v1859, %v1857
        %v1888 = vpack.c.b16 %v1862, %v1860
        %v1889 = vpack.c.b16 %v1863, %v1861
        %v1890 = vpack.c.b16 %v1866, %v1864
        %v1891 = vpack.c.b16 %v1867, %v1865
        %v1892 = vpack.c.b16 %v1870, %v1868
        %v1893 = vpack.c.b16 %v1871, %v1869
        %v1894 = vpack.c.b16 %v1874, %v1872
        %v1895 = vpack.c.b16 %v1875, %v1873
        %v1896 = vpack.c.b16 %v1878, %v1876
        %v1897 = vpack.c.b16 %v1879, %v1877
        %v1898 = vpack.c.b16 %v1882, %v1880
        %v1899 = vpack.c.b16 %v1883, %v1881
        %1916 = vmatprep.subr.bf16.mxu0 %v1885
        %1917 = vmatpush1.bf16.msra.mxu0 %v1884
        %1918 = vmatprep.subr.bf16.mxu0 %v1887
        %1919 = vmatpush1.bf16.msra.mxu0 %v1886
        %1920 = vmatprep.subr.bf16.mxu0 %v1889
        %1921 = vmatpush1.bf16.msra.mxu0 %v1888
        %1922 = vmatprep.subr.bf16.mxu0 %v1891
        %1923 = vmatpush1.bf16.msra.mxu0 %v1890
        %1924 = vmatprep.subr.bf16.mxu0 %v1893
        %1925 = vmatpush1.bf16.msra.mxu0 %v1892
        %1926 = vmatprep.subr.bf16.mxu0 %v1895
        %1927 = vmatpush1.bf16.msra.mxu0 %v1894
        %1928 = vmatprep.subr.bf16.mxu0 %v1897
        %1929 = vmatpush1.bf16.msra.mxu0 %v1896
        %1930 = vmatprep.subr.bf16.mxu0 %v1899
        %1931 = vmatpush1.bf16.msra.mxu0 %v1898
        %1932 = vmatprep.subr.bf16.mxu0 0
        %1933 = vmatpush1.bf16.msra.mxu0 0
        %1934 = vmatprep.subr.bf16.mxu0 0
        %1935 = vmatpush1.bf16.msra.mxu0 0
        %1936 = vmatprep.subr.bf16.mxu0 0
        %1937 = vmatpush1.bf16.msra.mxu0 0
        %1938 = vmatprep.subr.bf16.mxu0 0
        %1939 = vmatpush1.bf16.msra.mxu0 0
        %1940 = vmatprep.subr.bf16.mxu0 0
        %1941 = vmatpush1.bf16.msra.mxu0 0
        %1942 = vmatprep.subr.bf16.mxu0 0
        %1943 = vmatpush1.bf16.msra.mxu0 0
        %1944 = vmatprep.subr.bf16.mxu0 0
        %1945 = vmatpush1.bf16.msra.mxu0 0
        %1946 = vmatprep.subr.bf16.mxu0 0
        %1947 = vmatpush1.bf16.msra.mxu0 0
        %1948 = vmatprep.mubr.bf16.mxu0 0
        %1949 = vmatmul.mubr.bf16.gmra.mrb[0].mxu0 %v1822
        %v1950 = vpop.f32.mrb[0].mxu0
        %v1951 = vadd.f32 %v1829, %v1950
        %v1952 = vpop.f32.mrb[0].mxu0
        %v1953 = vadd.f32 %v1833, %v1952
        %v1954 = vpop.f32.mrb[0].mxu0
        %v1955 = vadd.f32 %v1829, %v1954
        %v1956 = vpop.f32.mrb[0].mxu0
        %v1957 = vadd.f32 %v1833, %v1956
        %1958 = vmatprep.mubr.bf16.mxu0 0
        %1959 = vmatmul.mubr.bf16.gmra.mrb[0].mxu0 %v1823
        %v1960 = vpop.f32.mrb[0].mxu0
        %v1961 = vadd.f32 %v1829, %v1960
        %v1962 = vpop.f32.mrb[0].mxu0
        %v1963 = vadd.f32 %v1833, %v1962
        %v1964 = vpop.f32.mrb[0].mxu0
        %v1965 = vadd.f32 %v1829, %v1964
        %v1966 = vpop.f32.mrb[0].mxu0
        %v1967 = vadd.f32 %v1833, %v1966
        %1968 = vdwg.mxu0
        %v1969 = vmul.f32 %v1951, 0.5
        %v1970 = vmul.f32 %v1953, 0.5
        %v1971 = vmul.f32 %v1955, 0.5
        %v1972 = vmul.f32 %v1957, 0.5
        %v1973 = vmul.f32 %v1961, 0.5
        %v1974 = vmul.f32 %v1963, 0.5
        %v1975 = vmul.f32 %v1965, 0.5
        %v1976 = vmul.f32 %v1967, 0.5
        %v1977 = vmul.f32 %v1951, 0.044715
        %v1978 = vmul.f32 %v1953, 0.044715
        %v1979 = vmul.f32 %v1955, 0.044715
        %v1980 = vmul.f32 %v1957, 0.044715
        %v1981 = vmul.f32 %v1961, 0.044715
        %v1982 = vmul.f32 %v1963, 0.044715
        %v1983 = vmul.f32 %v1965, 0.044715
        %v1984 = vmul.f32 %v1967, 0.044715
        %v1985 = vmul.f32 %v1977, %v1951
        %v1986 = vmul.f32 %v1978, %v1953
        %v1987 = vmul.f32 %v1979, %v1955
        %v1988 = vmul.f32 %v1980, %v1957
        %v1989 = vmul.f32 %v1981, %v1961
        %v1990 = vmul.f32 %v1982, %v1963
        %v1991 = vmul.f32 %v1983, %v1965
        %v1992 = vmul.f32 %v1984, %v1967
        %v1993 = vmul.f32 %v1985, %v1951
        %v1994 = vmul.f32 %v1986, %v1953
        %v1995 = vmul.f32 %v1987, %v1955
        %v1996 = vmul.f32 %v1988, %v1957
        %v1997 = vmul.f32 %v1989, %v1961
        %v1998 = vmul.f32 %v1990, %v1963
        %v1999 = vmul.f32 %v1991, %v1965
        %v2000 = vmul.f32 %v1992, %v1967
        %v2001 = vadd.f32 %v1951, %v1993
        %v2002 = vadd.f32 %v1953, %v1994
        %v2003 = vadd.f32 %v1955, %v1995
        %v2004 = vadd.f32 %v1957, %v1996
        %v2005 = vadd.f32 %v1961, %v1997
        %v2006 = vadd.f32 %v1963, %v1998
        %v2007 = vadd.f32 %v1965, %v1999
        %v2008 = vadd.f32 %v1967, %v2000
        %v2009 = vmul.f32 %v2001, 0.7978846
        %v2010 = vmul.f32 %v2002, 0.7978846
        %v2011 = vmul.f32 %v2003, 0.7978846
        %v2012 = vmul.f32 %v2004, 0.7978846
        %v2013 = vmul.f32 %v2005, 0.7978846
        %v2014 = vmul.f32 %v2006, 0.7978846
        %v2015 = vmul.f32 %v2007, 0.7978846
        %v2016 = vmul.f32 %v2008, 0.7978846
        %v2017 = vtanh.pop %v2009
        %v2018 = vtanh.pop %v2010
        %v2019 = vtanh.pop %v2011
        %v2020 = vtanh.pop %v2012
        %v2021 = vtanh.pop %v2013
        %v2022 = vtanh.pop %v2014
        %v2023 = vtanh.pop %v2015
        %v2024 = vtanh.pop %v2016
        %v2025 = vadd.f32 %v2017, 1.0
        %v2026 = vadd.f32 %v2018, 1.0
        %v2027 = vadd.f32 %v2019, 1.0
        %v2028 = vadd.f32 %v2020, 1.0
        %v2029 = vadd.f32 %v2021, 1.0
        %v2030 = vadd.f32 %v2022, 1.0
        %v2031 = vadd.f32 %v2023, 1.0
        %v2032 = vadd.f32 %v2024, 1.0
        %v2033 = vmul.f32 %v1969, %v2025
        %v2034 = vmul.f32 %v1970, %v2026
        %v2035 = vmul.f32 %v1971, %v2027
        %v2036 = vmul.f32 %v1972, %v2028
        %v2037 = vmul.f32 %v1973, %v2029
        %v2038 = vmul.f32 %v1974, %v2030
        %v2039 = vmul.f32 %v1975, %v2031
        %v2040 = vmul.f32 %v1976, %v2032
        %v2041 = vld [vmem:[%s698] sm:$0xf]
        %v2042 = vld [vmem:[%s698 + $0x4] sm:$0xf]
        %v2043 = vld [vmem:[%s698 + $0x8] sm:$0xf]
        %v2044 = vld [vmem:[%s698 + $0xc] sm:$0xf]
        %v2045 = vld [vmem:[%s698 + $0x10] sm:$0xf]
        %v2046 = vld [vmem:[%s698 + $0x14] sm:$0xf]
        %v2047 = vld [vmem:[%s698 + $0x18] sm:$0xf]
        %v2048 = vld [vmem:[%s698 + $0x1c] sm:$0xf]
        %v2049 = vld [vmem:[%s698 + $0x20] sm:$0xf]
        %v2050 = vld [vmem:[%s698 + $0x24] sm:$0xf]
        %v2051 = vld [vmem:[%s698 + $0x28] sm:$0xf]
        %v2052 = vld [vmem:[%s698 + $0x2c] sm:$0xf]
        %v2053 = vld [vmem:[%s698 + $0x30] sm:$0xf]
        %v2054 = vld [vmem:[%s698 + $0x34] sm:$0xf]
        %v2055 = vld [vmem:[%s698 + $0x38] sm:$0xf]
        %v2056 = vld [vmem:[%s698 + $0x3c] sm:$0xf]
        %v2057 = vld [vmem:[%s698 + $0x40] sm:$0xf]
        %v2058 = vld [vmem:[%s698 + $0x44] sm:$0xf]
        %v2059 = vld [vmem:[%s698 + $0x48] sm:$0xf]
        %v2060 = vld [vmem:[%s698 + $0x4c] sm:$0xf]
        %v2061 = vld [vmem:[%s698 + $0x50] sm:$0xf]
        %v2062 = vld [vmem:[%s698 + $0x54] sm:$0xf]
        %v2063 = vld [vmem:[%s698 + $0x58] sm:$0xf]
        %v2064 = vld [vmem:[%s698 + $0x5c] sm:$0xf]
        %v2065 = vld [vmem:[%s698 + $0x60] sm:$0xf]
        %v2066 = vld [vmem:[%s698 + $0x64] sm:$0xf]
        %v2067 = vld [vmem:[%s698 + $0x68] sm:$0xf]
        %v2068 = vld [vmem:[%s698 + $0x6c] sm:$0xf]
        %v2069 = vld [vmem:[%s698 + $0x70] sm:$0xf]
        %v2070 = vld [vmem:[%s698 + $0x74] sm:$0xf]
        %v2071 = vld [vmem:[%s698 + $0x78] sm:$0xf]
        %v2072 = vld [vmem:[%s698 + $0x7c] sm:$0xf]
        %v2073 = vpack.c.bf16 %v2035, %v2033
        %v2074 = vpack.c.bf16 %v2036, %v2034
        %v2075 = vpack.c.bf16 %v2039, %v2037
        %v2076 = vpack.c.bf16 %v2040, %v2038
        %v2077 = vld [vmem:[%s802] sm:$0x1]
        %v2079 = vlaneseq
        %v2080 = vshrl.u32 %v2079, 7
        %v2081 = vsub.s32 0, %v2080
        %v2082 = vrot.slane %v2077, %v2081
        %v2116 = vunpack.c.l.b16 %v2041
        %v2117 = vunpack.c.l.b16 %v2042
        %v2118 = vunpack.c.l.b16 %v2043
        %v2119 = vunpack.c.l.b16 %v2044
        %v2120 = vunpack.c.l.b16 %v2045
        %v2121 = vunpack.c.l.b16 %v2046
        %v2122 = vunpack.c.l.b16 %v2047
        %v2123 = vunpack.c.l.b16 %v2048
        %v2124 = vunpack.c.l.b16 %v2049
        %v2125 = vunpack.c.l.b16 %v2050
        %v2126 = vunpack.c.l.b16 %v2051
        %v2127 = vunpack.c.l.b16 %v2052
        %v2128 = vunpack.c.l.b16 %v2053
        %v2129 = vunpack.c.l.b16 %v2054
        %v2130 = vunpack.c.l.b16 %v2055
        %v2131 = vunpack.c.l.b16 %v2056
        %v2132 = vunpack.c.l.b16 %v2057
        %v2133 = vunpack.c.l.b16 %v2058
        %v2134 = vunpack.c.l.b16 %v2059
        %v2135 = vunpack.c.l.b16 %v2060
        %v2136 = vunpack.c.l.b16 %v2061
        %v2137 = vunpack.c.l.b16 %v2062
        %v2138 = vunpack.c.l.b16 %v2063
        %v2139 = vunpack.c.l.b16 %v2064
        %v2140 = vunpack.c.l.b16 %v2065
        %v2141 = vunpack.c.l.b16 %v2066
        %v2142 = vunpack.c.l.b16 %v2067
        %v2143 = vunpack.c.l.b16 %v2068
        %v2144 = vunpack.c.l.b16 %v2069
        %v2145 = vunpack.c.l.b16 %v2070
        %v2146 = vunpack.c.l.b16 %v2071
        %v2147 = vunpack.c.l.b16 %v2072
        %v2148 = vpack.c.b16 %v2117, %v2116
        %v2149 = vpack.c.b16 %v2119, %v2118
        %v2150 = vpack.c.b16 %v2121, %v2120
        %v2151 = vpack.c.b16 %v2123, %v2122
        %v2152 = vpack.c.b16 %v2125, %v2124
        %v2153 = vpack.c.b16 %v2127, %v2126
        %v2154 = vpack.c.b16 %v2129, %v2128
        %v2155 = vpack.c.b16 %v2131, %v2130
        %v2156 = vpack.c.b16 %v2133, %v2132
        %v2157 = vpack.c.b16 %v2135, %v2134
        %v2158 = vpack.c.b16 %v2137, %v2136
        %v2159 = vpack.c.b16 %v2139, %v2138
        %v2160 = vpack.c.b16 %v2141, %v2140
        %v2161 = vpack.c.b16 %v2143, %v2142
        %v2162 = vpack.c.b16 %v2145, %v2144
        %v2163 = vpack.c.b16 %v2147, %v2146
        %2180 = vmatprep.subr.bf16.mxu0 0
        %2181 = vmatpush1.bf16.msra.mxu0 %v2148
        %2182 = vmatprep.subr.bf16.mxu0 0
        %2183 = vmatpush1.bf16.msra.mxu0 %v2149
        %2184 = vmatprep.subr.bf16.mxu0 0
        %2185 = vmatpush1.bf16.msra.mxu0 %v2150
        %2186 = vmatprep.subr.bf16.mxu0 0
        %2187 = vmatpush1.bf16.msra.mxu0 %v2151
        %2188 = vmatprep.subr.bf16.mxu0 0
        %2189 = vmatpush1.bf16.msra.mxu0 %v2152
        %2190 = vmatprep.subr.bf16.mxu0 0
        %2191 = vmatpush1.bf16.msra.mxu0 %v2153
        %2192 = vmatprep.subr.bf16.mxu0 0
        %2193 = vmatpush1.bf16.msra.mxu0 %v2154
        %2194 = vmatprep.subr.bf16.mxu0 0
        %2195 = vmatpush1.bf16.msra.mxu0 %v2155
        %2196 = vmatprep.subr.bf16.mxu0 0
        %2197 = vmatpush1.bf16.msra.mxu0 %v2156
        %2198 = vmatprep.subr.bf16.mxu0 0
        %2199 = vmatpush1.bf16.msra.mxu0 %v2157
        %2200 = vmatprep.subr.bf16.mxu0 0
        %2201 = vmatpush1.bf16.msra.mxu0 %v2158
        %2202 = vmatprep.subr.bf16.mxu0 0
        %2203 = vmatpush1.bf16.msra.mxu0 %v2159
        %2204 = vmatprep.subr.bf16.mxu0 0
        %2205 = vmatpush1.bf16.msra.mxu0 %v2160
        %2206 = vmatprep.subr.bf16.mxu0 0
        %2207 = vmatpush1.bf16.msra.mxu0 %v2161
        %2208 = vmatprep.subr.bf16.mxu0 0
        %2209 = vmatpush1.bf16.msra.mxu0 %v2162
        %2210 = vmatprep.subr.bf16.mxu0 0
        %2211 = vmatpush1.bf16.msra.mxu0 %v2163
        %2212 = vmatprep.mubr.bf16.mxu0 %v2074
        %2213 = vmatmul.mubr.bf16.gmra.mrb[0].mxu0 %v2073
        %v2214 = vpop.f32.mrb[0].mxu0
        %v2215 = vadd.f32 %v2082, %v2214
        %v2216 = vpop.f32.mrb[0].mxu0
        %v2217 = vpop.f32.mrb[0].mxu0
        %v2218 = vadd.f32 %v2082, %v2217
        %v2219 = vpop.f32.mrb[0].mxu0
        %2220 = vmatprep.mubr.bf16.mxu0 %v2076
        %2221 = vmatmul.mubr.bf16.gmra.mrb[0].mxu0 %v2075
        %v2222 = vpop.f32.mrb[0].mxu0
        %v2223 = vadd.f32 %v2082, %v2222
        %v2224 = vpop.f32.mrb[0].mxu0
        %v2225 = vpop.f32.mrb[0].mxu0
        %v2226 = vadd.f32 %v2082, %v2225
        %v2227 = vpop.f32.mrb[0].mxu0
        %2228 = vdwg.mxu0
        %v2229 = vadd.f32 %v1802, %v2215
        %v2230 = vadd.f32 %v1803, %v2218
        %v2231 = vadd.f32 %v1804, %v2223
        %v2232 = vadd.f32 %v1805, %v2226
        %v2233 = vld [vmem:[%s805] sm:$0x1]
        %v2234 = vld [vmem:[%s808] sm:$0x1]
        %2235 = vadd.xlane.f32.xlu0 %v2229
        %v2236 = vpop.xlane.xlu0 %2235
        %2237 = vadd.xlane.f32.xlu0 %v2230
        %v2238 = vpop.xlane.xlu0 %2237
        %2239 = vadd.xlane.f32.xlu0 %v2231
        %v2240 = vpop.xlane.xlu0 %2239
        %2241 = vadd.xlane.f32.xlu0 %v2232
        %v2242 = vpop.xlane.xlu0 %2241
        %v2243 = vmul.f32 %v2236, %v1749
        %v2244 = vmul.f32 %v2238, %v1749
        %v2245 = vmul.f32 %v2240, %v1749
        %v2246 = vmul.f32 %v2242, %v1749
        %v2247 = vsub.f32 %v2229, %v2243
        %v2248 = vsub.f32 %v2230, %v2244
        %v2249 = vsub.f32 %v2231, %v2245
        %v2250 = vsub.f32 %v2232, %v2246
        %v2251 = vmul.f32 %v2247, %v2247
        %v2252 = vmul.f32 %v2248, %v2248
        %v2253 = vmul.f32 %v2249, %v2249
        %v2254 = vmul.f32 %v2250, %v2250
        %2255 = vadd.xlane.f32.xlu0 %v2251
        %v2256 = vpop.xlane.xlu0 %2255
        %2257 = vadd.xlane.f32.xlu0 %v2252
        %v2258 = vpop.xlane.xlu0 %2257
        %2259 = vadd.xlane.f32.xlu0 %v2253
        %v2260 = vpop.xlane.xlu0 %2259
        %2261 = vadd.xlane.f32.xlu0 %v2254
        %v2262 = vpop.xlane.xlu0 %2261
        %v2263 = vmul.f32 %v2256, %v1749
        %v2264 = vmul.f32 %v2258, %v1749
        %v2265 = vmul.f32 %v2260, %v1749
        %v2266 = vmul.f32 %v2262, %v1749
        %v2267 = vadd.f32 %v2263, 1e-12
        %v2268 = vadd.f32 %v2264, 1e-12
        %v2269 = vadd.f32 %v2265, 1e-12
        %v2270 = vadd.f32 %v2266, 1e-12
        %v2271 = vrsqrt.pop %v2267
        %v2272 = vrsqrt.pop %v2268
        %v2273 = vrsqrt.pop %v2269
        %v2274 = vrsqrt.pop %v2270
        %v2275 = vmul.f32 %v2247, %v2271
        %v2276 = vmul.f32 %v2248, %v2272
        %v2277 = vmul.f32 %v2249, %v2273
        %v2278 = vmul.f32 %v2250, %v2274
        %v2280 = vlaneseq
        %v2281 = vshrl.u32 %v2280, 7
        %v2282 = vsub.s32 0, %v2281
        %v2283 = vrot.slane %v2233, %v2282
        %v2285 = vmul.f32 %v2275, %v2283
        %v2286 = vmul.f32 %v2276, %v2283
        %v2287 = vmul.f32 %v2277, %v2283
        %v2288 = vmul.f32 %v2278, %v2283
        %v2290 = vlaneseq
        %v2291 = vshrl.u32 %v2290, 7
        %v2292 = vsub.s32 0, %v2291
        %v2293 = vrot.slane %v2234, %v2292
        %v2295 = vadd.f32 %v2285, %v2293
        %v2296 = vadd.f32 %v2286, %v2293
        %v2297 = vadd.f32 %v2287, %v2293
        %v2298 = vadd.f32 %v2288, %v2293
        %2299 = vst [vmem:[#allocation2] sm:$0xff] %v2295
        %2300 = vst [vmem:[#allocation2 + $0x8] sm:$0xff] %v2296
        %2301 = vst [vmem:[#allocation2 + $0x10] sm:$0xff] %v2297
        %2302 = vst [vmem:[#allocation2 + $0x18] sm:$0xff] %v2298
        %p2303 = scmp.eq.s32.totalorder %s31, 1
        // Predicated region
        $region121: #{tpu_custom_call.1} parent=83 // pred_check
          %p2304 = pneg %p2303
        $region122: #{tpu_custom_call.1} parent=83 // pred_check_branch
          %2306 = sbr.rel (%p2304) target = $region124
        $region123: #{tpu_custom_call.1} parent=83 // pred_region
          %2307 = vst [vmem:[#allocation15] sm:$0xff] %v2295
          %2308 = vst [vmem:[#allocation15 + $0x8] sm:$0xff] %v2296
          %2309 = vst [vmem:[#allocation15 + $0x10] sm:$0xff] %v2297
          %2310 = vst [vmem:[#allocation15 + $0x18] sm:$0xff] %v2298
        $region124: #{tpu_custom_call.1} parent=83 // pred_fallthru
          _
        // Predicated region
        $region125: #{tpu_custom_call.1} parent=83 // pred_check
          %p2311 = pneg %p440
        $region126: #{tpu_custom_call.1} parent=83 // pred_check_branch
          %2313 = sbr.rel (%p2311) target = $region128
        $region127: #{tpu_custom_call.1} parent=83 // pred_region
          %s2315 = ssub.s32 512, 512
          %2316 = vsyncadd [#allocation5], %s2315
          %s2317 = sshll.u32 [#allocation15], 4
          %s2318 = int_to_ptr.vmem [resolvable:$true] %s2317
          %2323 = dma.vmem_to_hbm [thread:$0]  %s2318, 512, %s16, [#allocation5], 128, 128, 8
        $region128: #{tpu_custom_call.1} parent=83 // pred_fallthru
          _
        // Predicated region
        $region129: #{tpu_custom_call.1} parent=83 // pred_check
          %p2324 = pneg %p440
        $region130: #{tpu_custom_call.1} parent=83 // pred_check_branch
          %2326 = sbr.rel (%p2324) target = $region132
        $region131: #{tpu_custom_call.1} parent=83 // pred_region
          %2327 = dma.done [#allocation5], 512
        $region132: #{tpu_custom_call.1} parent=83 // pred_fallthru
          _
      $region84: #{tpu_custom_call.1} parent=5 // pred_fallthru
        _
      %p2328 = scmp.le.s32.totalorder 2, %s26
      // Predicated region
      $region133: #{tpu_custom_call.1} parent=5 // pred_check
        %p2329 = pneg %p2328
      $region134: #{tpu_custom_call.1} parent=5 // pred_check_branch
        %2331 = sbr.rel (%p2329) target = $region136
      $region135: #{tpu_custom_call.1} parent=5 // pred_region
        %s2332 = ssub.s32 %s26, 2
      $region136: #{tpu_custom_call.1} parent=5 // pred_fallthru
        _
    $region6: #{tpu_custom_call.1} parent=1 // loop_footer
      %s30 = sadd.s32 1, %s26
    $region7: #{tpu_custom_call.1} parent=1 // loop_footer_branch
      %25 = sbr.rel target = $region3
    $region8: #{tpu_custom_call.1} parent=1 // loop_exit
      _
    %2333 = vsyncpa [#allocation4], 1
    %s2334 = scalar_lea.sflag [#allocation4], 1
    %2335 = vsyncpa %s2334, 1
    %2336 = vsyncpa [#allocation7], 1
    %2337 = vsyncpa [#allocation10], 1
    %2338 = vsyncpa [#allocation5], 1
    %s2339 = scalar_lea.sflag [#allocation5], 1
    %2340 = vsyncpa %s2339, 1

</llo_original>
